<compile_context>
chip_gen: v5e
topology: v5e:2x2
jax: 0.10.0
libtpu: 0.0.40
codegen_flags: <defaults>
</compile_context>

<pallas_src>
import jax
import jax.numpy as jnp
import numpy as np
from jax import lax
from jax.experimental import pallas as pl
from jax.experimental.pallas import tpu as pltpu

K = 21
PAD_H = 4
PAD_W = 23
PAD_H_EFF = K - 1 - PAD_H   # 16 : zero padding applied to H
OFF_W = PAD_W - K + 1       # 3  : column read offset (crop, no W padding needed)


def _round_up(x, m):
    return (x + m - 1) // m * m


def _convt_sigmoid_kernel(x_ref, b_ref, bias_ref, o_ref):
    # x_ref    : (tm_halo, w_in_pad)          bf16  halo-expanded rows of this tile
    # b_ref    : (K, w_in_pad, w_out_pad)     bf16  band matrices (grid-invariant)
    # bias_ref : (1,)                         f32   SMEM scalar
    # o_ref    : (tm, w_out_pad)              bf16
    tm = o_ref.shape[0]
    acc = jnp.zeros(o_ref.shape, jnp.float32)
    for kh in range(K):  # static unroll; all slice offsets are compile-time constants
        acc = acc + jnp.dot(x_ref[pl.ds(kh, tm), :], b_ref[kh],
                            preferred_element_type=jnp.float32)
    o_ref[...] = jax.nn.sigmoid(acc + bias_ref[0]).astype(o_ref.dtype)


@jax.jit
def conv_transpose_sigmoid(x_nchw, weight, bias):
    """x_nchw: (N, 1, H, W); weight: (1, 1, K, K) (ConvTranspose2d layout
    (C_in, C_out, kH, kW)); bias: (1,).  Returns (N, 1, H_out, W_out) f32."""
    n, c, h_in, w_in = x_nchw.shape
    assert c == 1
    h_out = h_in + K - 1 - 2 * PAD_H
    w_out = w_in + K - 1 - 2 * PAD_W
    assert h_out > 0 and w_out > 0, "input spatial dims too small for this conv_t"

    w_in_pad = _round_up(w_in, 128)    # lane-dense LHS columns
    w_out_pad = _round_up(w_out, 128)  # lane-dense output columns

    # ---- band-matrix weights: B[kh, col, j] = Wflip[kh, col - j - OFF_W] ------
    wf = weight[0, 0, ::-1, ::-1].astype(jnp.float32)        # flipped kernel (K, K)
    cols = jnp.arange(w_in)[:, None]
    js = jnp.arange(w_out)[None, :]
    kw = cols - js - OFF_W
    valid = (kw >= 0) & (kw < K)
    bmat = jnp.where(valid[None, :, :], wf[:, jnp.clip(kw, 0, K - 1)], 0.0)
    bmat = jnp.pad(bmat, ((0, 0), (0, w_in_pad - w_in), (0, w_out_pad - w_out)))
    b_op = bmat.astype(jnp.bfloat16)                         # (K, w_in_pad, w_out_pad)
    # TODO(synk): for very large W, add a W-tile grid axis and slice B into
    # (K, TW+K-1, TW) blocks (with a column halo on x) so the resident weight
    # operand stays inside v7x's 64 MiB VMEM and the band sparsity is not wasted.

    # ---- input: bf16, per-batch H padding, lane padding, per-tile row halo ----
    tm = min(256, _round_up(h_out, 8))           # output rows per grid step
    grid_h = pl.cdiv(h_out, tm)
    tm_halo = _round_up(tm + K - 1, 8)           # input rows needed per step

    x_hpad = jnp.pad(
        x_nchw[:, 0, :, :].astype(jnp.bfloat16),
        ((0, 0), (PAD_H_EFF, PAD_H_EFF), (0, w_in_pad - w_in)),
    )                                            # (n, h_out + K - 1, w_in_pad)
    h_need = (grid_h - 1) * tm + tm_halo
    x_hpad = jnp.pad(x_hpad, ((0, 0), (0, h_need - x_hpad.shape[1]), (0, 0)))
    row_idx = jnp.arange(grid_h)[:, None] * tm + jnp.arange(tm_halo)[None, :]
    x_blocks = x_hpad[:, row_idx, :]             # (n, grid_h, tm_halo, w_in_pad)

    # ---- scheduler hints ------------------------------------------------------
    flops = 2 * n * grid_h * tm * K * w_in_pad * w_out_pad
    bytes_accessed = (n * grid_h * tm_halo * w_in_pad * 2
                      + K * w_in_pad * w_out_pad * 2
                      + n * grid_h * tm * w_out_pad * 2)
    vmem_need = (2 * tm_halo * w_in_pad * 2          # double-buffered x block
                 + 2 * K * w_in_pad * w_out_pad * 2  # weights (conservative 2x)
                 + 2 * tm * w_out_pad * 2)           # double-buffered out tile
    vmem_limit = int(min(max(2 * vmem_need, 32 << 20), 100 << 20))

    out_pad = pl.pallas_call(
        _convt_sigmoid_kernel,
        out_shape=jax.ShapeDtypeStruct((n, grid_h * tm, w_out_pad), jnp.bfloat16),
        grid=(n, grid_h),
        in_specs=[
            pl.BlockSpec((None, None, tm_halo, w_in_pad),
                         lambda b, t: (b, t, 0, 0)),                  # x tile (+halo)
            pl.BlockSpec((K, w_in_pad, w_out_pad), lambda b, t: (0, 0, 0)),  # weights
            pl.BlockSpec(memory_space=pltpu.MemorySpace.SMEM),        # bias scalar
        ],
        out_specs=pl.BlockSpec((None, tm, w_out_pad), lambda b, t: (b, t, 0)),
        compiler_params=pltpu.CompilerParams(
            dimension_semantics=("parallel", "parallel"),
            vmem_limit_bytes=vmem_limit),
        cost_estimate=pl.CostEstimate(
            flops=flops,
            transcendentals=n * grid_h * tm * w_out_pad,
            bytes_accessed=bytes_accessed),
    )(x_blocks, b_op, bias.astype(jnp.float32))

    out = out_pad[:, :h_out, :w_out].astype(jnp.float32)
    return out[:, None, :, :]


def _reference(x_nchw, weight, bias):
    """Pure-JAX reference: transposed conv as forward correlation w/ flipped kernel."""
    wf = weight[:, :, ::-1, ::-1].transpose(1, 0, 2, 3)  # -> (C_out, C_in, K, K)
    y = lax.conv_general_dilated(
        x_nchw.astype(jnp.float32), wf.astype(jnp.float32),
        window_strides=(1, 1),
        padding=((PAD_H_EFF, PAD_H_EFF), (0, 0)),
        dimension_numbers=("NCHW", "OIHW", "NCHW"),
        precision=lax.Precision.HIGHEST,
    )
    w_out = x_nchw.shape[3] + K - 1 - 2 * PAD_W
    y = y[:, :, :, OFF_W:OFF_W + w_out] + bias.reshape(1, -1, 1, 1)
    return jax.nn.sigmoid(y)


if __name__ == "__main__":
    key = jax.random.PRNGKey(0)
    k_x, k_w, k_b = jax.random.split(key, 3)

    # NOTE: the original script's v=(1,2,24,5) is incompatible with the conv
    # (channel mismatch / negative W_out); use a small valid NCHW input instead.
    N, C, H, W = 2, 1, 16, 32
    x = jax.random.normal(k_x, (N, C, H, W), dtype=jnp.float32)

    # Deterministic parameter init (torch-style uniform bound = 1/sqrt(fan_in)).
    bound = 1.0 / np.sqrt(1 * K * K)
    weight = jax.random.uniform(k_w, (1, 1, K, K), jnp.float32, -bound, bound)
    bias = jax.random.uniform(k_b, (1,), jnp.float32, -bound, bound)

    out = jax.block_until_ready(conv_transpose_sigmoid(x, weight, bias))
    ref = jax.block_until_ready(_reference(x, weight, bias))

    # bf16 MXU operands + bf16 output store (f32 accumulate/sigmoid) -> relaxed tol.
    np.testing.assert_allclose(np.asarray(out), np.asarray(ref), rtol=2e-2, atol=2e-2)
    assert out.shape == (N, 1, H + 12, W - 26)

    print("KERNEL_OK")
</pallas_src>

<mosaic_0001>
module attributes {stable_mosaic.version = 11 : i64} {
  func.func @_convt_sigmoid_kernel(%arg0: i32, %arg1: i32, %arg2: memref<1x1x56x128xbf16, #tpu.memory_space<vmem>>, %arg3: memref<21x128x128xbf16, #tpu.memory_space<vmem>>, %arg4: memref<1xf32, #tpu.memory_space<smem>>, %arg5: memref<1x32x128xbf16, #tpu.memory_space<vmem>>) attributes {dimension_semantics = [#tpu.dimension_semantics<parallel>, #tpu.dimension_semantics<parallel>], iteration_bounds = array<i64: 2, 1>, scalar_prefetch = 0 : i64, scratch_operands = 0 : i64, tpu.core_type = #tpu.core_type<tc>, window_params = [{transform_indices = @transform_0, window_bounds = array<i64: 1, 1, 56, 128>}, {pipeline_mode = #tpu.pipeline_mode<synchronous>, transform_indices = @transform_1, window_bounds = array<i64: 21, 128, 128>}, {transform_indices = @transform_2, window_bounds = array<i64: 1>}, {transform_indices = @transform_3, window_bounds = array<i64: 1, 32, 128>}]} {
    %cst = arith.constant 0.000000e+00 : f32
    %0 = vector.broadcast %cst : f32 to vector<32x128xf32>
    %c0 = arith.constant 0 : index
    %c0_0 = arith.constant 0 : index
    %c0_1 = arith.constant 0 : index
    %c0_2 = arith.constant 0 : index
    %1 = vector.load %arg2[%c0, %c0_0, %c0_1, %c0_2] : memref<1x1x56x128xbf16, #tpu.memory_space<vmem>>, vector<1x1x32x128xbf16>
    %2 = vector.shape_cast %1 : vector<1x1x32x128xbf16> to vector<32x128xbf16>
    %c0_3 = arith.constant 0 : index
    %c0_4 = arith.constant 0 : index
    %c0_5 = arith.constant 0 : index
    %3 = vector.load %arg3[%c0_3, %c0_4, %c0_5] : memref<21x128x128xbf16, #tpu.memory_space<vmem>>, vector<1x128x128xbf16>
    %4 = vector.shape_cast %3 : vector<1x128x128xbf16> to vector<128x128xbf16>
    %cst_6 = arith.constant dense<0.000000e+00> : vector<32x128xf32>
    %5 = tpu.matmul %2, %4, %cst_6 {dimension_numbers = #tpu.dot_dimension_numbers<[1], [0], [0], [1], [0, 0, 1, 1], [], []>} : vector<32x128xbf16>, vector<128x128xbf16>, vector<32x128xf32> -> vector<32x128xf32>
    %6 = arith.addf %0, %5 : vector<32x128xf32>
    %c0_7 = arith.constant 0 : index
    %c0_8 = arith.constant 0 : index
    %c1 = arith.constant 1 : index
    %c0_9 = arith.constant 0 : index
    %7 = vector.load %arg2[%c0_7, %c0_8, %c1, %c0_9] : memref<1x1x56x128xbf16, #tpu.memory_space<vmem>>, vector<1x1x32x128xbf16>
    %8 = vector.shape_cast %7 : vector<1x1x32x128xbf16> to vector<32x128xbf16>
    %c1_10 = arith.constant 1 : index
    %c0_11 = arith.constant 0 : index
    %c0_12 = arith.constant 0 : index
    %9 = vector.load %arg3[%c1_10, %c0_11, %c0_12] : memref<21x128x128xbf16, #tpu.memory_space<vmem>>, vector<1x128x128xbf16>
    %10 = vector.shape_cast %9 : vector<1x128x128xbf16> to vector<128x128xbf16>
    %cst_13 = arith.constant dense<0.000000e+00> : vector<32x128xf32>
    %11 = tpu.matmul %8, %10, %cst_13 {dimension_numbers = #tpu.dot_dimension_numbers<[1], [0], [0], [1], [0, 0, 1, 1], [], []>} : vector<32x128xbf16>, vector<128x128xbf16>, vector<32x128xf32> -> vector<32x128xf32>
    %12 = arith.addf %6, %11 : vector<32x128xf32>
    %c0_14 = arith.constant 0 : index
    %c0_15 = arith.constant 0 : index
    %c2 = arith.constant 2 : index
    %c0_16 = arith.constant 0 : index
    %13 = vector.load %arg2[%c0_14, %c0_15, %c2, %c0_16] : memref<1x1x56x128xbf16, #tpu.memory_space<vmem>>, vector<1x1x32x128xbf16>
    %14 = vector.shape_cast %13 : vector<1x1x32x128xbf16> to vector<32x128xbf16>
    %c2_17 = arith.constant 2 : index
    %c0_18 = arith.constant 0 : index
    %c0_19 = arith.constant 0 : index
    %15 = vector.load %arg3[%c2_17, %c0_18, %c0_19] : memref<21x128x128xbf16, #tpu.memory_space<vmem>>, vector<1x128x128xbf16>
    %16 = vector.shape_cast %15 : vector<1x128x128xbf16> to vector<128x128xbf16>
    %cst_20 = arith.constant dense<0.000000e+00> : vector<32x128xf32>
    %17 = tpu.matmul %14, %16, %cst_20 {dimension_numbers = #tpu.dot_dimension_numbers<[1], [0], [0], [1], [0, 0, 1, 1], [], []>} : vector<32x128xbf16>, vector<128x128xbf16>, vector<32x128xf32> -> vector<32x128xf32>
    %18 = arith.addf %12, %17 : vector<32x128xf32>
    %c0_21 = arith.constant 0 : index
    %c0_22 = arith.constant 0 : index
    %c3 = arith.constant 3 : index
    %c0_23 = arith.constant 0 : index
    %19 = vector.load %arg2[%c0_21, %c0_22, %c3, %c0_23] : memref<1x1x56x128xbf16, #tpu.memory_space<vmem>>, vector<1x1x32x128xbf16>
    %20 = vector.shape_cast %19 : vector<1x1x32x128xbf16> to vector<32x128xbf16>
    %c3_24 = arith.constant 3 : index
    %c0_25 = arith.constant 0 : index
    %c0_26 = arith.constant 0 : index
    %21 = vector.load %arg3[%c3_24, %c0_25, %c0_26] : memref<21x128x128xbf16, #tpu.memory_space<vmem>>, vector<1x128x128xbf16>
    %22 = vector.shape_cast %21 : vector<1x128x128xbf16> to vector<128x128xbf16>
    %cst_27 = arith.constant dense<0.000000e+00> : vector<32x128xf32>
    %23 = tpu.matmul %20, %22, %cst_27 {dimension_numbers = #tpu.dot_dimension_numbers<[1], [0], [0], [1], [0, 0, 1, 1], [], []>} : vector<32x128xbf16>, vector<128x128xbf16>, vector<32x128xf32> -> vector<32x128xf32>
    %24 = arith.addf %18, %23 : vector<32x128xf32>
    %c0_28 = arith.constant 0 : index
    %c0_29 = arith.constant 0 : index
    %c4 = arith.constant 4 : index
    %c0_30 = arith.constant 0 : index
    %25 = vector.load %arg2[%c0_28, %c0_29, %c4, %c0_30] : memref<1x1x56x128xbf16, #tpu.memory_space<vmem>>, vector<1x1x32x128xbf16>
    %26 = vector.shape_cast %25 : vector<1x1x32x128xbf16> to vector<32x128xbf16>
    %c4_31 = arith.constant 4 : index
    %c0_32 = arith.constant 0 : index
    %c0_33 = arith.constant 0 : index
    %27 = vector.load %arg3[%c4_31, %c0_32, %c0_33] : memref<21x128x128xbf16, #tpu.memory_space<vmem>>, vector<1x128x128xbf16>
    %28 = vector.shape_cast %27 : vector<1x128x128xbf16> to vector<128x128xbf16>
    %cst_34 = arith.constant dense<0.000000e+00> : vector<32x128xf32>
    %29 = tpu.matmul %26, %28, %cst_34 {dimension_numbers = #tpu.dot_dimension_numbers<[1], [0], [0], [1], [0, 0, 1, 1], [], []>} : vector<32x128xbf16>, vector<128x128xbf16>, vector<32x128xf32> -> vector<32x128xf32>
    %30 = arith.addf %24, %29 : vector<32x128xf32>
    %c0_35 = arith.constant 0 : index
    %c0_36 = arith.constant 0 : index
    %c5 = arith.constant 5 : index
    %c0_37 = arith.constant 0 : index
    %31 = vector.load %arg2[%c0_35, %c0_36, %c5, %c0_37] : memref<1x1x56x128xbf16, #tpu.memory_space<vmem>>, vector<1x1x32x128xbf16>
    %32 = vector.shape_cast %31 : vector<1x1x32x128xbf16> to vector<32x128xbf16>
    %c5_38 = arith.constant 5 : index
    %c0_39 = arith.constant 0 : index
    %c0_40 = arith.constant 0 : index
    %33 = vector.load %arg3[%c5_38, %c0_39, %c0_40] : memref<21x128x128xbf16, #tpu.memory_space<vmem>>, vector<1x128x128xbf16>
    %34 = vector.shape_cast %33 : vector<1x128x128xbf16> to vector<128x128xbf16>
    %cst_41 = arith.constant dense<0.000000e+00> : vector<32x128xf32>
    %35 = tpu.matmul %32, %34, %cst_41 {dimension_numbers = #tpu.dot_dimension_numbers<[1], [0], [0], [1], [0, 0, 1, 1], [], []>} : vector<32x128xbf16>, vector<128x128xbf16>, vector<32x128xf32> -> vector<32x128xf32>
    %36 = arith.addf %30, %35 : vector<32x128xf32>
    %c0_42 = arith.constant 0 : index
    %c0_43 = arith.constant 0 : index
    %c6 = arith.constant 6 : index
    %c0_44 = arith.constant 0 : index
    %37 = vector.load %arg2[%c0_42, %c0_43, %c6, %c0_44] : memref<1x1x56x128xbf16, #tpu.memory_space<vmem>>, vector<1x1x32x128xbf16>
    %38 = vector.shape_cast %37 : vector<1x1x32x128xbf16> to vector<32x128xbf16>
    %c6_45 = arith.constant 6 : index
    %c0_46 = arith.constant 0 : index
    %c0_47 = arith.constant 0 : index
    %39 = vector.load %arg3[%c6_45, %c0_46, %c0_47] : memref<21x128x128xbf16, #tpu.memory_space<vmem>>, vector<1x128x128xbf16>
    %40 = vector.shape_cast %39 : vector<1x128x128xbf16> to vector<128x128xbf16>
    %cst_48 = arith.constant dense<0.000000e+00> : vector<32x128xf32>
    %41 = tpu.matmul %38, %40, %cst_48 {dimension_numbers = #tpu.dot_dimension_numbers<[1], [0], [0], [1], [0, 0, 1, 1], [], []>} : vector<32x128xbf16>, vector<128x128xbf16>, vector<32x128xf32> -> vector<32x128xf32>
    %42 = arith.addf %36, %41 : vector<32x128xf32>
    %c0_49 = arith.constant 0 : index
    %c0_50 = arith.constant 0 : index
    %c7 = arith.constant 7 : index
    %c0_51 = arith.constant 0 : index
    %43 = vector.load %arg2[%c0_49, %c0_50, %c7, %c0_51] : memref<1x1x56x128xbf16, #tpu.memory_space<vmem>>, vector<1x1x32x128xbf16>
    %44 = vector.shape_cast %43 : vector<1x1x32x128xbf16> to vector<32x128xbf16>
    %c7_52 = arith.constant 7 : index
    %c0_53 = arith.constant 0 : index
    %c0_54 = arith.constant 0 : index
    %45 = vector.load %arg3[%c7_52, %c0_53, %c0_54] : memref<21x128x128xbf16, #tpu.memory_space<vmem>>, vector<1x128x128xbf16>
    %46 = vector.shape_cast %45 : vector<1x128x128xbf16> to vector<128x128xbf16>
    %cst_55 = arith.constant dense<0.000000e+00> : vector<32x128xf32>
    %47 = tpu.matmul %44, %46, %cst_55 {dimension_numbers = #tpu.dot_dimension_numbers<[1], [0], [0], [1], [0, 0, 1, 1], [], []>} : vector<32x128xbf16>, vector<128x128xbf16>, vector<32x128xf32> -> vector<32x128xf32>
    %48 = arith.addf %42, %47 : vector<32x128xf32>
    %c0_56 = arith.constant 0 : index
    %c0_57 = arith.constant 0 : index
    %c8 = arith.constant 8 : index
    %c0_58 = arith.constant 0 : index
    %49 = vector.load %arg2[%c0_56, %c0_57, %c8, %c0_58] : memref<1x1x56x128xbf16, #tpu.memory_space<vmem>>, vector<1x1x32x128xbf16>
    %50 = vector.shape_cast %49 : vector<1x1x32x128xbf16> to vector<32x128xbf16>
    %c8_59 = arith.constant 8 : index
    %c0_60 = arith.constant 0 : index
    %c0_61 = arith.constant 0 : index
    %51 = vector.load %arg3[%c8_59, %c0_60, %c0_61] : memref<21x128x128xbf16, #tpu.memory_space<vmem>>, vector<1x128x128xbf16>
    %52 = vector.shape_cast %51 : vector<1x128x128xbf16> to vector<128x128xbf16>
    %cst_62 = arith.constant dense<0.000000e+00> : vector<32x128xf32>
    %53 = tpu.matmul %50, %52, %cst_62 {dimension_numbers = #tpu.dot_dimension_numbers<[1], [0], [0], [1], [0, 0, 1, 1], [], []>} : vector<32x128xbf16>, vector<128x128xbf16>, vector<32x128xf32> -> vector<32x128xf32>
    %54 = arith.addf %48, %53 : vector<32x128xf32>
    %c0_63 = arith.constant 0 : index
    %c0_64 = arith.constant 0 : index
    %c9 = arith.constant 9 : index
    %c0_65 = arith.constant 0 : index
    %55 = vector.load %arg2[%c0_63, %c0_64, %c9, %c0_65] : memref<1x1x56x128xbf16, #tpu.memory_space<vmem>>, vector<1x1x32x128xbf16>
    %56 = vector.shape_cast %55 : vector<1x1x32x128xbf16> to vector<32x128xbf16>
    %c9_66 = arith.constant 9 : index
    %c0_67 = arith.constant 0 : index
    %c0_68 = arith.constant 0 : index
    %57 = vector.load %arg3[%c9_66, %c0_67, %c0_68] : memref<21x128x128xbf16, #tpu.memory_space<vmem>>, vector<1x128x128xbf16>
    %58 = vector.shape_cast %57 : vector<1x128x128xbf16> to vector<128x128xbf16>
    %cst_69 = arith.constant dense<0.000000e+00> : vector<32x128xf32>
    %59 = tpu.matmul %56, %58, %cst_69 {dimension_numbers = #tpu.dot_dimension_numbers<[1], [0], [0], [1], [0, 0, 1, 1], [], []>} : vector<32x128xbf16>, vector<128x128xbf16>, vector<32x128xf32> -> vector<32x128xf32>
    %60 = arith.addf %54, %59 : vector<32x128xf32>
    %c0_70 = arith.constant 0 : index
    %c0_71 = arith.constant 0 : index
    %c10 = arith.constant 10 : index
    %c0_72 = arith.constant 0 : index
    %61 = vector.load %arg2[%c0_70, %c0_71, %c10, %c0_72] : memref<1x1x56x128xbf16, #tpu.memory_space<vmem>>, vector<1x1x32x128xbf16>
    %62 = vector.shape_cast %61 : vector<1x1x32x128xbf16> to vector<32x128xbf16>
    %c10_73 = arith.constant 10 : index
    %c0_74 = arith.constant 0 : index
    %c0_75 = arith.constant 0 : index
    %63 = vector.load %arg3[%c10_73, %c0_74, %c0_75] : memref<21x128x128xbf16, #tpu.memory_space<vmem>>, vector<1x128x128xbf16>
    %64 = vector.shape_cast %63 : vector<1x128x128xbf16> to vector<128x128xbf16>
    %cst_76 = arith.constant dense<0.000000e+00> : vector<32x128xf32>
    %65 = tpu.matmul %62, %64, %cst_76 {dimension_numbers = #tpu.dot_dimension_numbers<[1], [0], [0], [1], [0, 0, 1, 1], [], []>} : vector<32x128xbf16>, vector<128x128xbf16>, vector<32x128xf32> -> vector<32x128xf32>
    %66 = arith.addf %60, %65 : vector<32x128xf32>
    %c0_77 = arith.constant 0 : index
    %c0_78 = arith.constant 0 : index
    %c11 = arith.constant 11 : index
    %c0_79 = arith.constant 0 : index
    %67 = vector.load %arg2[%c0_77, %c0_78, %c11, %c0_79] : memref<1x1x56x128xbf16, #tpu.memory_space<vmem>>, vector<1x1x32x128xbf16>
    %68 = vector.shape_cast %67 : vector<1x1x32x128xbf16> to vector<32x128xbf16>
    %c11_80 = arith.constant 11 : index
    %c0_81 = arith.constant 0 : index
    %c0_82 = arith.constant 0 : index
    %69 = vector.load %arg3[%c11_80, %c0_81, %c0_82] : memref<21x128x128xbf16, #tpu.memory_space<vmem>>, vector<1x128x128xbf16>
    %70 = vector.shape_cast %69 : vector<1x128x128xbf16> to vector<128x128xbf16>
    %cst_83 = arith.constant dense<0.000000e+00> : vector<32x128xf32>
    %71 = tpu.matmul %68, %70, %cst_83 {dimension_numbers = #tpu.dot_dimension_numbers<[1], [0], [0], [1], [0, 0, 1, 1], [], []>} : vector<32x128xbf16>, vector<128x128xbf16>, vector<32x128xf32> -> vector<32x128xf32>
    %72 = arith.addf %66, %71 : vector<32x128xf32>
    %c0_84 = arith.constant 0 : index
    %c0_85 = arith.constant 0 : index
    %c12 = arith.constant 12 : index
    %c0_86 = arith.constant 0 : index
    %73 = vector.load %arg2[%c0_84, %c0_85, %c12, %c0_86] : memref<1x1x56x128xbf16, #tpu.memory_space<vmem>>, vector<1x1x32x128xbf16>
    %74 = vector.shape_cast %73 : vector<1x1x32x128xbf16> to vector<32x128xbf16>
    %c12_87 = arith.constant 12 : index
    %c0_88 = arith.constant 0 : index
    %c0_89 = arith.constant 0 : index
    %75 = vector.load %arg3[%c12_87, %c0_88, %c0_89] : memref<21x128x128xbf16, #tpu.memory_space<vmem>>, vector<1x128x128xbf16>
    %76 = vector.shape_cast %75 : vector<1x128x128xbf16> to vector<128x128xbf16>
    %cst_90 = arith.constant dense<0.000000e+00> : vector<32x128xf32>
    %77 = tpu.matmul %74, %76, %cst_90 {dimension_numbers = #tpu.dot_dimension_numbers<[1], [0], [0], [1], [0, 0, 1, 1], [], []>} : vector<32x128xbf16>, vector<128x128xbf16>, vector<32x128xf32> -> vector<32x128xf32>
    %78 = arith.addf %72, %77 : vector<32x128xf32>
    %c0_91 = arith.constant 0 : index
    %c0_92 = arith.constant 0 : index
    %c13 = arith.constant 13 : index
    %c0_93 = arith.constant 0 : index
    %79 = vector.load %arg2[%c0_91, %c0_92, %c13, %c0_93] : memref<1x1x56x128xbf16, #tpu.memory_space<vmem>>, vector<1x1x32x128xbf16>
    %80 = vector.shape_cast %79 : vector<1x1x32x128xbf16> to vector<32x128xbf16>
    %c13_94 = arith.constant 13 : index
    %c0_95 = arith.constant 0 : index
    %c0_96 = arith.constant 0 : index
    %81 = vector.load %arg3[%c13_94, %c0_95, %c0_96] : memref<21x128x128xbf16, #tpu.memory_space<vmem>>, vector<1x128x128xbf16>
    %82 = vector.shape_cast %81 : vector<1x128x128xbf16> to vector<128x128xbf16>
    %cst_97 = arith.constant dense<0.000000e+00> : vector<32x128xf32>
    %83 = tpu.matmul %80, %82, %cst_97 {dimension_numbers = #tpu.dot_dimension_numbers<[1], [0], [0], [1], [0, 0, 1, 1], [], []>} : vector<32x128xbf16>, vector<128x128xbf16>, vector<32x128xf32> -> vector<32x128xf32>
    %84 = arith.addf %78, %83 : vector<32x128xf32>
    %c0_98 = arith.constant 0 : index
    %c0_99 = arith.constant 0 : index
    %c14 = arith.constant 14 : index
    %c0_100 = arith.constant 0 : index
    %85 = vector.load %arg2[%c0_98, %c0_99, %c14, %c0_100] : memref<1x1x56x128xbf16, #tpu.memory_space<vmem>>, vector<1x1x32x128xbf16>
    %86 = vector.shape_cast %85 : vector<1x1x32x128xbf16> to vector<32x128xbf16>
    %c14_101 = arith.constant 14 : index
    %c0_102 = arith.constant 0 : index
    %c0_103 = arith.constant 0 : index
    %87 = vector.load %arg3[%c14_101, %c0_102, %c0_103] : memref<21x128x128xbf16, #tpu.memory_space<vmem>>, vector<1x128x128xbf16>
    %88 = vector.shape_cast %87 : vector<1x128x128xbf16> to vector<128x128xbf16>
    %cst_104 = arith.constant dense<0.000000e+00> : vector<32x128xf32>
    %89 = tpu.matmul %86, %88, %cst_104 {dimension_numbers = #tpu.dot_dimension_numbers<[1], [0], [0], [1], [0, 0, 1, 1], [], []>} : vector<32x128xbf16>, vector<128x128xbf16>, vector<32x128xf32> -> vector<32x128xf32>
    %90 = arith.addf %84, %89 : vector<32x128xf32>
    %c0_105 = arith.constant 0 : index
    %c0_106 = arith.constant 0 : index
    %c15 = arith.constant 15 : index
    %c0_107 = arith.constant 0 : index
    %91 = vector.load %arg2[%c0_105, %c0_106, %c15, %c0_107] : memref<1x1x56x128xbf16, #tpu.memory_space<vmem>>, vector<1x1x32x128xbf16>
    %92 = vector.shape_cast %91 : vector<1x1x32x128xbf16> to vector<32x128xbf16>
    %c15_108 = arith.constant 15 : index
    %c0_109 = arith.constant 0 : index
    %c0_110 = arith.constant 0 : index
    %93 = vector.load %arg3[%c15_108, %c0_109, %c0_110] : memref<21x128x128xbf16, #tpu.memory_space<vmem>>, vector<1x128x128xbf16>
    %94 = vector.shape_cast %93 : vector<1x128x128xbf16> to vector<128x128xbf16>
    %cst_111 = arith.constant dense<0.000000e+00> : vector<32x128xf32>
    %95 = tpu.matmul %92, %94, %cst_111 {dimension_numbers = #tpu.dot_dimension_numbers<[1], [0], [0], [1], [0, 0, 1, 1], [], []>} : vector<32x128xbf16>, vector<128x128xbf16>, vector<32x128xf32> -> vector<32x128xf32>
    %96 = arith.addf %90, %95 : vector<32x128xf32>
    %c0_112 = arith.constant 0 : index
    %c0_113 = arith.constant 0 : index
    %c16 = arith.constant 16 : index
    %c0_114 = arith.constant 0 : index
    %97 = vector.load %arg2[%c0_112, %c0_113, %c16, %c0_114] : memref<1x1x56x128xbf16, #tpu.memory_space<vmem>>, vector<1x1x32x128xbf16>
    %98 = vector.shape_cast %97 : vector<1x1x32x128xbf16> to vector<32x128xbf16>
    %c16_115 = arith.constant 16 : index
    %c0_116 = arith.constant 0 : index
    %c0_117 = arith.constant 0 : index
    %99 = vector.load %arg3[%c16_115, %c0_116, %c0_117] : memref<21x128x128xbf16, #tpu.memory_space<vmem>>, vector<1x128x128xbf16>
    %100 = vector.shape_cast %99 : vector<1x128x128xbf16> to vector<128x128xbf16>
    %cst_118 = arith.constant dense<0.000000e+00> : vector<32x128xf32>
    %101 = tpu.matmul %98, %100, %cst_118 {dimension_numbers = #tpu.dot_dimension_numbers<[1], [0], [0], [1], [0, 0, 1, 1], [], []>} : vector<32x128xbf16>, vector<128x128xbf16>, vector<32x128xf32> -> vector<32x128xf32>
    %102 = arith.addf %96, %101 : vector<32x128xf32>
    %c0_119 = arith.constant 0 : index
    %c0_120 = arith.constant 0 : index
    %c17 = arith.constant 17 : index
    %c0_121 = arith.constant 0 : index
    %103 = vector.load %arg2[%c0_119, %c0_120, %c17, %c0_121] : memref<1x1x56x128xbf16, #tpu.memory_space<vmem>>, vector<1x1x32x128xbf16>
    %104 = vector.shape_cast %103 : vector<1x1x32x128xbf16> to vector<32x128xbf16>
    %c17_122 = arith.constant 17 : index
    %c0_123 = arith.constant 0 : index
    %c0_124 = arith.constant 0 : index
    %105 = vector.load %arg3[%c17_122, %c0_123, %c0_124] : memref<21x128x128xbf16, #tpu.memory_space<vmem>>, vector<1x128x128xbf16>
    %106 = vector.shape_cast %105 : vector<1x128x128xbf16> to vector<128x128xbf16>
    %cst_125 = arith.constant dense<0.000000e+00> : vector<32x128xf32>
    %107 = tpu.matmul %104, %106, %cst_125 {dimension_numbers = #tpu.dot_dimension_numbers<[1], [0], [0], [1], [0, 0, 1, 1], [], []>} : vector<32x128xbf16>, vector<128x128xbf16>, vector<32x128xf32> -> vector<32x128xf32>
    %108 = arith.addf %102, %107 : vector<32x128xf32>
    %c0_126 = arith.constant 0 : index
    %c0_127 = arith.constant 0 : index
    %c18 = arith.constant 18 : index
    %c0_128 = arith.constant 0 : index
    %109 = vector.load %arg2[%c0_126, %c0_127, %c18, %c0_128] : memref<1x1x56x128xbf16, #tpu.memory_space<vmem>>, vector<1x1x32x128xbf16>
    %110 = vector.shape_cast %109 : vector<1x1x32x128xbf16> to vector<32x128xbf16>
    %c18_129 = arith.constant 18 : index
    %c0_130 = arith.constant 0 : index
    %c0_131 = arith.constant 0 : index
    %111 = vector.load %arg3[%c18_129, %c0_130, %c0_131] : memref<21x128x128xbf16, #tpu.memory_space<vmem>>, vector<1x128x128xbf16>
    %112 = vector.shape_cast %111 : vector<1x128x128xbf16> to vector<128x128xbf16>
    %cst_132 = arith.constant dense<0.000000e+00> : vector<32x128xf32>
    %113 = tpu.matmul %110, %112, %cst_132 {dimension_numbers = #tpu.dot_dimension_numbers<[1], [0], [0], [1], [0, 0, 1, 1], [], []>} : vector<32x128xbf16>, vector<128x128xbf16>, vector<32x128xf32> -> vector<32x128xf32>
    %114 = arith.addf %108, %113 : vector<32x128xf32>
    %c0_133 = arith.constant 0 : index
    %c0_134 = arith.constant 0 : index
    %c19 = arith.constant 19 : index
    %c0_135 = arith.constant 0 : index
    %115 = vector.load %arg2[%c0_133, %c0_134, %c19, %c0_135] : memref<1x1x56x128xbf16, #tpu.memory_space<vmem>>, vector<1x1x32x128xbf16>
    %116 = vector.shape_cast %115 : vector<1x1x32x128xbf16> to vector<32x128xbf16>
    %c19_136 = arith.constant 19 : index
    %c0_137 = arith.constant 0 : index
    %c0_138 = arith.constant 0 : index
    %117 = vector.load %arg3[%c19_136, %c0_137, %c0_138] : memref<21x128x128xbf16, #tpu.memory_space<vmem>>, vector<1x128x128xbf16>
    %118 = vector.shape_cast %117 : vector<1x128x128xbf16> to vector<128x128xbf16>
    %cst_139 = arith.constant dense<0.000000e+00> : vector<32x128xf32>
    %119 = tpu.matmul %116, %118, %cst_139 {dimension_numbers = #tpu.dot_dimension_numbers<[1], [0], [0], [1], [0, 0, 1, 1], [], []>} : vector<32x128xbf16>, vector<128x128xbf16>, vector<32x128xf32> -> vector<32x128xf32>
    %120 = arith.addf %114, %119 : vector<32x128xf32>
    %c0_140 = arith.constant 0 : index
    %c0_141 = arith.constant 0 : index
    %c20 = arith.constant 20 : index
    %c0_142 = arith.constant 0 : index
    %121 = vector.load %arg2[%c0_140, %c0_141, %c20, %c0_142] : memref<1x1x56x128xbf16, #tpu.memory_space<vmem>>, vector<1x1x32x128xbf16>
    %122 = vector.shape_cast %121 : vector<1x1x32x128xbf16> to vector<32x128xbf16>
    %c20_143 = arith.constant 20 : index
    %c0_144 = arith.constant 0 : index
    %c0_145 = arith.constant 0 : index
    %123 = vector.load %arg3[%c20_143, %c0_144, %c0_145] : memref<21x128x128xbf16, #tpu.memory_space<vmem>>, vector<1x128x128xbf16>
    %124 = vector.shape_cast %123 : vector<1x128x128xbf16> to vector<128x128xbf16>
    %cst_146 = arith.constant dense<0.000000e+00> : vector<32x128xf32>
    %125 = tpu.matmul %122, %124, %cst_146 {dimension_numbers = #tpu.dot_dimension_numbers<[1], [0], [0], [1], [0, 0, 1, 1], [], []>} : vector<32x128xbf16>, vector<128x128xbf16>, vector<32x128xf32> -> vector<32x128xf32>
    %126 = arith.addf %120, %125 : vector<32x128xf32>
    %c0_147 = arith.constant 0 : index
    %127 = memref.load %arg4[%c0_147] : memref<1xf32, #tpu.memory_space<smem>>
    %128 = vector.broadcast %127 : f32 to vector<32x128xf32>
    %129 = arith.addf %126, %128 : vector<32x128xf32>
    %130 = arith.negf %129 : vector<32x128xf32>
    %131 = math.exp %130 : vector<32x128xf32>
    %cst_148 = arith.constant 1.000000e+00 : f32
    %132 = vector.broadcast %cst_148 : f32 to vector<32x128xf32>
    %133 = arith.addf %132, %131 : vector<32x128xf32>
    %134 = arith.divf %132, %133 : vector<32x128xf32>
    %135 = arith.truncf %134 : vector<32x128xf32> to vector<32x128xbf16>
    %c0_149 = arith.constant 0 : index
    %c0_150 = arith.constant 0 : index
    %c0_151 = arith.constant 0 : index
    %136 = vector.load %arg5[%c0_149, %c0_150, %c0_151] : memref<1x32x128xbf16, #tpu.memory_space<vmem>>, vector<1x32x128xbf16>
    %137 = vector.shape_cast %136 : vector<1x32x128xbf16> to vector<32x128xbf16>
    %138 = vector.shape_cast %135 : vector<32x128xbf16> to vector<1x32x128xbf16>
    tpu.vector_store %arg5[%c0_149, %c0_150, %c0_151], %138 {strides = array<i32>} : memref<1x32x128xbf16, #tpu.memory_space<vmem>>, vector<1x32x128xbf16>,
    return
  }
  func.func @transform_0(%arg0: i32, %arg1: i32) -> (i32, i32, i32, i32) {
    %c0_i32 = arith.constant 0 : i32
    %c0_i32_0 = arith.constant 0 : i32
    %c0_i32_1 = arith.constant 0 : i32
    return %arg0, %arg1, %c0_i32, %c0_i32_0 : i32, i32, i32, i32
  }
  func.func @transform_1(%arg0: i32, %arg1: i32) -> (i32, i32, i32) {
    %c0_i32 = arith.constant 0 : i32
    %c0_i32_0 = arith.constant 0 : i32
    %c0_i32_1 = arith.constant 0 : i32
    %c0_i32_2 = arith.constant 0 : i32
    return %c0_i32, %c0_i32_0, %c0_i32_1 : i32, i32, i32
  }
  func.func @transform_2(%arg0: i32, %arg1: i32) -> i32 {
    %c0_i32 = arith.constant 0 : i32
    %c0_i32_0 = arith.constant 0 : i32
    return %c0_i32 : i32
  }
  func.func @transform_3(%arg0: i32, %arg1: i32) -> (i32, i32, i32) {
    %c0_i32 = arith.constant 0 : i32
    %c0_i32_0 = arith.constant 0 : i32
    return %arg0, %arg1, %c0_i32 : i32, i32, i32
  }
}

</mosaic_0001>

<llo_original>
// kernel: conv_transpose_sigmoid.1
$region0: #{conv_transpose_sigmoid.1}
  #allocation0 [shape = 'u32[]', space=smem, size = 0x4, offset = 0x4, fixed_abs, tag = 'smem constant byte address 0x4 - core index']
  #allocation1 [shape = 'u32[72,128]{1,0:T(1,128)}', space=vmem, size = 0x9000, scoped, tag = 'internal scratch']
  #allocation2 [shape = 'f32[1]{0:T(128)S(6)}', space=smem, size = 0x200, scoped, tag = 'scoped memory for conv_transpose_sigmoid.1']
  %s0 = inlined_call_operand.vmem [shape: bf16[2,1,56,128], index: 0, kind: input, shape index: {}]
  %s1 = inlined_call_operand.vmem [shape: bf16[21,128,128], index: 1, kind: input, shape index: {}]
  %s2 = inlined_call_operand.<no memory space> [shape: f32[1], index: 2, kind: input, shape index: {}]
  %s3 = inlined_call_operand.vmem [shape: bf16[2,32,128], index: 3, kind: output, shape index: {}]
  %s4 = sld [smem:[#allocation0]]
  $region45: #{conv_transpose_sigmoid.1} parent=0
    _
  %s6 = ssub.s32 1, %s4
  %s7 = scalar_select 0, %s6, %s4
  %8 = sst [smem:[#allocation2]] %s2
  loop: start=0, step=1, limit=4
  $region2: #{conv_transpose_sigmoid.1} parent=0 // loop_pre_header
    _
  $region3: #{conv_transpose_sigmoid.1} parent=0 // loop_header
    %s10 = sphi 0, %s14
    %p11 = scmp.ge.s32.totalorder %s10, 4
    %s17 = sphi 0, %s29
    %s18 = sphi 0, %s25
    %s19 = sphi 0, %s17
    %s20 = sphi 0, %s18
    %s21 = sphi 0, %s19
    %s22 = sphi 0, %s20
    %s34 = sphi 0, %s36
    %s37 = sphi 0, %s34
    %s38 = sphi 0, %s37
    %s54 = sphi 0, %s38
    %s58 = sphi 0, %s58
    %s60 = sphi 0, %s58
    %s61 = sphi 0, %s60
    %s75 = sphi 0, %s61
    %s79 = sphi 0, %s79
    %s81 = sphi 0, %s79
    %s82 = sphi 0, %s81
    %s96 = sphi 0, %s82
    %s104 = sphi 0, %s106
    %s107 = sphi 0, %s104
    %s108 = sphi 0, %s107
    %s124 = sphi 0, %s108
  $region4: #{conv_transpose_sigmoid.1} parent=0 // loop_header_branch
    %13 = sbr.rel (%p11) target = $region8
  $region5: #{conv_transpose_sigmoid.1} parent=0 // loop_body
    %s15 = ssub.s32 %s10, 1
    %s16 = ssub.s32 %s10, 2
    %s23 = sadd.s32 1, %s18
    %p24 = scmp.ge.s32.totalorder %s23, 1
    %s25 = scalar_select %p24, 0, %s23
    %s26 = sadd.s32 1, %s17
    %s27 = scalar_select %p24, %s26, %s17
    %p28 = scmp.ge.s32.totalorder %s27, 2
    %s29 = scalar_select %p28, 0, %s27
    %s30 = ssub.s32 %s17, %s29
    %s31 = ssub.s32 %s18, %s25
    %s32 = sor.u32 %s30, %s31
    %p33 = scmp.eq.s32.totalorder %s32, 0
    %s35 = sadd.s32 %s34, 1
    %s36 = scalar_select %p33, %s34, %s35
    %p39 = pneg %p33
    %p40 = scmp.eq.s32.totalorder %s10, 1
    %p41 = por %p39, %p40
    %p42 = scmp.ne.s32.totalorder %s34, %s37
    %p43 = scmp.eq.s32.totalorder %s10, 0
    %p44 = por %p42, %p43
    %p45 = scmp.ne.s32.totalorder %s34, %s37
    %p46 = scmp.eq.s32.totalorder %s15, 1
    %p47 = por %p45, %p46
    %p48 = scmp.ne.s32.totalorder %s37, %s38
    %p49 = scmp.eq.s32.totalorder %s15, 0
    %p50 = por %p48, %p49
    %p51 = scmp.ne.s32.totalorder %s37, %s38
    %p52 = scmp.eq.s32.totalorder %s16, 1
    %p53 = por %p51, %p52
    %p55 = scmp.ne.s32.totalorder %s38, %s54
    %p56 = scmp.eq.s32.totalorder %s16, 0
    %p57 = por %p55, %p56
    %s59 = sadd.s32 %s58, 1
    %p62 = scmp.eq.s32.totalorder %s10, 1
    %p63 = scmp.ne.s32.totalorder %s58, %s60
    %p64 = scmp.eq.s32.totalorder %s10, 0
    %p65 = por %p63, %p64
    %p66 = scmp.ne.s32.totalorder %s58, %s60
    %p67 = scmp.eq.s32.totalorder %s15, 1
    %p68 = por %p66, %p67
    %p69 = scmp.ne.s32.totalorder %s60, %s61
    %p70 = scmp.eq.s32.totalorder %s15, 0
    %p71 = por %p69, %p70
    %p72 = scmp.ne.s32.totalorder %s60, %s61
    %p73 = scmp.eq.s32.totalorder %s16, 1
    %p74 = por %p72, %p73
    %p76 = scmp.ne.s32.totalorder %s61, %s75
    %p77 = scmp.eq.s32.totalorder %s16, 0
    %p78 = por %p76, %p77
    %s80 = sadd.s32 %s79, 1
    %p83 = scmp.eq.s32.totalorder %s10, 1
    %p84 = scmp.ne.s32.totalorder %s79, %s81
    %p85 = scmp.eq.s32.totalorder %s10, 0
    %p86 = por %p84, %p85
    %p87 = scmp.ne.s32.totalorder %s79, %s81
    %p88 = scmp.eq.s32.totalorder %s15, 1
    %p89 = por %p87, %p88
    %p90 = scmp.ne.s32.totalorder %s81, %s82
    %p91 = scmp.eq.s32.totalorder %s15, 0
    %p92 = por %p90, %p91
    %p93 = scmp.ne.s32.totalorder %s81, %s82
    %p94 = scmp.eq.s32.totalorder %s16, 1
    %p95 = por %p93, %p94
    %p97 = scmp.ne.s32.totalorder %s82, %s96
    %p98 = scmp.eq.s32.totalorder %s16, 0
    %p99 = por %p97, %p98
    %s100 = ssub.s32 %s17, %s29
    %s101 = ssub.s32 %s18, %s25
    %s102 = sor.u32 %s100, %s101
    %p103 = scmp.eq.s32.totalorder %s102, 0
    %s105 = sadd.s32 %s104, 1
    %s106 = scalar_select %p103, %s104, %s105
    %p109 = pneg %p103
    %p110 = scmp.eq.s32.totalorder %s10, 1
    %p111 = por %p109, %p110
    %p112 = scmp.ne.s32.totalorder %s104, %s107
    %p113 = scmp.eq.s32.totalorder %s10, 0
    %p114 = por %p112, %p113
    %p115 = scmp.ne.s32.totalorder %s104, %s107
    %p116 = scmp.eq.s32.totalorder %s15, 1
    %p117 = por %p115, %p116
    %p118 = scmp.ne.s32.totalorder %s107, %s108
    %p119 = scmp.eq.s32.totalorder %s15, 0
    %p120 = por %p118, %p119
    %p121 = scmp.ne.s32.totalorder %s107, %s108
    %p122 = scmp.eq.s32.totalorder %s16, 1
    %p123 = por %p121, %p122
    %p125 = scmp.ne.s32.totalorder %s108, %s124
    %p126 = scmp.eq.s32.totalorder %s16, 0
    %p127 = por %p125, %p126
    %p128 = scmp.le.s32.totalorder 1, %s10
    %p129 = scmp.lt.s32.totalorder %s10, 3
    %p130 = pnand %p128, %p129
    %p131 = pneg %p130
    // Predicated region
    $region9: #{conv_transpose_sigmoid.1} parent=5 // pred_check
      _
    $region10: #{conv_transpose_sigmoid.1} parent=5 // pred_check_branch
      %133 = sbr.rel (%p130) target = $region12
    $region11: #{conv_transpose_sigmoid.1} parent=5 // pred_region
      %s134 = ssub.s32 %s10, 1
      // Predicated region
      $region13: #{conv_transpose_sigmoid.1} parent=11 // pred_check
        %p135 = pneg %p71
      $region14: #{conv_transpose_sigmoid.1} parent=11 // pred_check_branch
        %137 = sbr.rel (%p135) target = $region16
      $region15: #{conv_transpose_sigmoid.1} parent=11 // pred_region
        _
      $region16: #{conv_transpose_sigmoid.1} parent=11 // pred_fallthru
        _
      // Predicated region
      $region17: #{conv_transpose_sigmoid.1} parent=11 // pred_check
        %p138 = pneg %p92
      $region18: #{conv_transpose_sigmoid.1} parent=11 // pred_check_branch
        %140 = sbr.rel (%p138) target = $region20
      $region19: #{conv_transpose_sigmoid.1} parent=11 // pred_region
        _
      $region20: #{conv_transpose_sigmoid.1} parent=11 // pred_fallthru
        _
    $region12: #{conv_transpose_sigmoid.1} parent=5 // pred_fallthru
      _
    %p141 = scmp.lt.s32.totalorder %s10, 2
    // Predicated region
    $region21: #{conv_transpose_sigmoid.1} parent=5 // pred_check
      %p142 = pneg %p141
    $region22: #{conv_transpose_sigmoid.1} parent=5 // pred_check_branch
      %144 = sbr.rel (%p142) target = $region24
    $region23: #{conv_transpose_sigmoid.1} parent=5 // pred_region
      // Predicated region
      $region25: #{conv_transpose_sigmoid.1} parent=23 // pred_check
        %p145 = pneg %p44
      $region26: #{conv_transpose_sigmoid.1} parent=23 // pred_check_branch
        %147 = sbr.rel (%p145) target = $region28
      $region27: #{conv_transpose_sigmoid.1} parent=23 // pred_region
        %p148 = scmp.lt.s32.totalorder %s17, 1
        %s149 = scalar_select %p148, %s17, 1
        %p150 = scmp.lt.s32.totalorder %s18, 0
        %s151 = scalar_select %p150, %s18, 0
        %s152 = smul.addr %s151, 7
        %s153 = smul.addr %s149, 7
        %s154 = sadd.s32 %s152, %s153
        %s155 = smul.addr %s154, 4
        %s156 = scalar_lea.vmem %s0, %s155
      $region28: #{conv_transpose_sigmoid.1} parent=23 // pred_fallthru
        _
    $region24: #{conv_transpose_sigmoid.1} parent=5 // pred_fallthru
      _
    %p157 = scmp.le.s32.totalorder 1, %s10
    %p158 = scmp.lt.s32.totalorder %s10, 3
    %p159 = pnand %p157, %p158
    %p160 = pneg %p159
    // Predicated region
    $region29: #{conv_transpose_sigmoid.1} parent=5 // pred_check
      _
    $region30: #{conv_transpose_sigmoid.1} parent=5 // pred_check_branch
      %162 = sbr.rel (%p159) target = $region32
    $region31: #{conv_transpose_sigmoid.1} parent=5 // pred_region
      %s163 = ssub.s32 %s10, 1
      %p164 = scmp.lt.s32.totalorder %s19, 1
      %s165 = scalar_select %p164, %s19, 1
      %p166 = scmp.lt.s32.totalorder %s20, 0
      %s167 = scalar_select %p166, %s20, 0
      %s168 = smul.addr %s167, 7
      %s169 = smul.addr %s165, 7
      %s170 = sadd.s32 %s168, %s169
      %s171 = smul.addr %s170, 4
      %s172 = scalar_lea.vmem %s0, %s171
      %p173 = pneg %p50
      %p174 = pneg %p47
      %p175 = pneg %p71
      %p176 = pneg %p68
      %p177 = pneg %p92
      %p178 = pneg %p89
      %p179 = pneg %p120
      %p180 = pneg %p117
      %s181 = smul.u32 4, %s20
      %p182 = scmp.lt.s32.totalorder %s19, 1
      %s183 = scalar_select %p182, %s19, 1
      %p184 = scmp.lt.s32.totalorder %s181, 3
      %s185 = scalar_select %p184, %s181, 3
      %s186 = smul.addr %s183, 4
      %s187 = sadd.s32 %s185, %s186
      %s188 = smul.addr %s187, 4
      %s189 = scalar_lea.vmem %s3, %s188
      %p190 = scmp.lt.s32.totalorder %s19, 1
      %s191 = scalar_select %p190, %s19, 1
      %p192 = scmp.lt.s32.totalorder %s20, 0
      %s193 = scalar_select %p192, %s20, 0
      %s194 = smul.addr %s193, 7
      %s195 = smul.addr %s191, 7
      %s196 = sadd.s32 %s194, %s195
      %s197 = smul.addr %s196, 4
      %s198 = scalar_lea.vmem %s0, %s197
      %s199 = smul.u32 4, %s20
      %p200 = scmp.lt.s32.totalorder %s19, 1
      %s201 = scalar_select %p200, %s19, 1
      %p202 = scmp.lt.s32.totalorder %s199, 3
      %s203 = scalar_select %p202, %s199, 3
      %s204 = smul.addr %s201, 4
      %s205 = sadd.s32 %s203, %s204
      %s206 = smul.addr %s205, 4
      %s207 = scalar_lea.vmem %s3, %s206
      %s208 = smul.u32 4, %s20
      %v209 = vld [vmem:[%s198] sm:$0xf]
      %v210 = vld [vmem:[%s198 + $0x4] sm:$0xf]
      %v211 = vld [vmem:[%s198 + $0x8] sm:$0xf]
      %v212 = vld [vmem:[%s198 + $0xc] sm:$0xf]
      %v213 = vld [vmem:[%s1] sm:$0xf]
      %v214 = vld [vmem:[%s1 + $0x4] sm:$0xf]
      %v215 = vld [vmem:[%s1 + $0x8] sm:$0xf]
      %v216 = vld [vmem:[%s1 + $0xc] sm:$0xf]
      %v217 = vld [vmem:[%s1 + $0x10] sm:$0xf]
      %v218 = vld [vmem:[%s1 + $0x14] sm:$0xf]
      %v219 = vld [vmem:[%s1 + $0x18] sm:$0xf]
      %v220 = vld [vmem:[%s1 + $0x1c] sm:$0xf]
      %v221 = vld [vmem:[%s1 + $0x20] sm:$0xf]
      %v222 = vld [vmem:[%s1 + $0x24] sm:$0xf]
      %v223 = vld [vmem:[%s1 + $0x28] sm:$0xf]
      %v224 = vld [vmem:[%s1 + $0x2c] sm:$0xf]
      %v225 = vld [vmem:[%s1 + $0x30] sm:$0xf]
      %v226 = vld [vmem:[%s1 + $0x34] sm:$0xf]
      %v227 = vld [vmem:[%s1 + $0x38] sm:$0xf]
      %v228 = vld [vmem:[%s1 + $0x3c] sm:$0xf]
      %v229 = vld [vmem:[%s198 + $0x10] sm:$0x1]
      %s230 = scalar_lea.vmem %s1, 64
      %v231 = vld [vmem:[%s230] sm:$0xf]
      %v232 = vld [vmem:[%s230 + $0x4] sm:$0xf]
      %v233 = vld [vmem:[%s230 + $0x8] sm:$0xf]
      %v234 = vld [vmem:[%s230 + $0xc] sm:$0xf]
      %v235 = vld [vmem:[%s230 + $0x10] sm:$0xf]
      %v236 = vld [vmem:[%s230 + $0x14] sm:$0xf]
      %v237 = vld [vmem:[%s230 + $0x18] sm:$0xf]
      %v238 = vld [vmem:[%s230 + $0x1c] sm:$0xf]
      %v239 = vld [vmem:[%s230 + $0x20] sm:$0xf]
      %v240 = vld [vmem:[%s230 + $0x24] sm:$0xf]
      %v241 = vld [vmem:[%s230 + $0x28] sm:$0xf]
      %v242 = vld [vmem:[%s230 + $0x2c] sm:$0xf]
      %v243 = vld [vmem:[%s230 + $0x30] sm:$0xf]
      %v244 = vld [vmem:[%s230 + $0x34] sm:$0xf]
      %v245 = vld [vmem:[%s230 + $0x38] sm:$0xf]
      %v246 = vld [vmem:[%s230 + $0x3c] sm:$0xf]
      %v252 = vunpack.c.l.b16 %v209
      %v253 = vunpack.c.l.b16 %v210
      %v254 = vunpack.c.l.b16 %v211
      %v255 = vunpack.c.l.b16 %v212
      %v256 = vunpack.c.l.b16 %v229
      %v257 = vpack.c.b16 %v253, %v252
      %v258 = vpack.c.b16 %v255, %v254
      %v259 = vpack.c.b16 %v256, %v256
      %vm260 = vsmask.f32 7424
      %v262 = vshrl.u32 %v257, 16
      %v264 = vshll.u32 %v257, 16
      %v266 = vrot.slane %v264, 1
      %v267 = vor.u32 %v262, %v266
      %v269 = vshll.u32 %v258, 16
      %v271 = vrot.slane %v269, 1
      %v272 = vsel %vm260, %v267, %v271
      %v273 = vshrl.u32 %v258, 16
      %v275 = vor.u32 %v273, %v271
      %v277 = vshll.u32 %v259, 16
      %v279 = vrot.slane %v277, 1
      %v280 = vsel %vm260, %v275, %v279
      %v299 = vunpack.c.l.b16 %v231
      %v300 = vunpack.c.l.b16 %v232
      %v301 = vunpack.c.l.b16 %v233
      %v302 = vunpack.c.l.b16 %v234
      %v303 = vunpack.c.l.b16 %v235
      %v304 = vunpack.c.l.b16 %v236
      %v305 = vunpack.c.l.b16 %v237
      %v306 = vunpack.c.l.b16 %v238
      %v307 = vunpack.c.l.b16 %v239
      %v308 = vunpack.c.l.b16 %v240
      %v309 = vunpack.c.l.b16 %v241
      %v310 = vunpack.c.l.b16 %v242
      %v311 = vunpack.c.l.b16 %v243
      %v312 = vunpack.c.l.b16 %v244
      %v313 = vunpack.c.l.b16 %v245
      %v314 = vunpack.c.l.b16 %v246
      %v315 = vpack.c.b16 %v300, %v299
      %v316 = vpack.c.b16 %v302, %v301
      %v317 = vpack.c.b16 %v304, %v303
      %v318 = vpack.c.b16 %v306, %v305
      %v319 = vpack.c.b16 %v308, %v307
      %v320 = vpack.c.b16 %v310, %v309
      %v321 = vpack.c.b16 %v312, %v311
      %v322 = vpack.c.b16 %v314, %v313
      %331 = vmatpush.bf16.msra.mxu0 %v322
      %332 = vmatpush.bf16.msra.mxu0 %v321
      %333 = vmatpush.bf16.msra.mxu0 %v320
      %334 = vmatpush.bf16.msra.mxu0 %v319
      %335 = vmatpush.bf16.msra.mxu0 %v318
      %336 = vmatpush.bf16.msra.mxu0 %v317
      %337 = vmatpush.bf16.msra.mxu0 %v316
      %338 = vmatpush.bf16.msra.mxu0 %v315
      %339 = vmatmul.bf16.gmra.mxu0 %v272
      %v340 = vpop.f32.mrf.mxu0
      %v341 = vadd.f32 0.0, %v340
      %v342 = vpop.f32.mrf.mxu0
      %v343 = vadd.f32 0.0, %v342
      %344 = vmatmul.bf16.gmra.mxu0 %v280
      %v345 = vpop.f32.mrf.mxu0
      %v346 = vadd.f32 0.0, %v345
      %v347 = vpop.f32.mrf.mxu0
      %v348 = vadd.f32 0.0, %v347
      %349 = vdwg.mxu0
      %v368 = vunpack.c.l.b16 %v213
      %v369 = vunpack.c.l.b16 %v214
      %v370 = vunpack.c.l.b16 %v215
      %v371 = vunpack.c.l.b16 %v216
      %v372 = vunpack.c.l.b16 %v217
      %v373 = vunpack.c.l.b16 %v218
      %v374 = vunpack.c.l.b16 %v219
      %v375 = vunpack.c.l.b16 %v220
      %v376 = vunpack.c.l.b16 %v221
      %v377 = vunpack.c.l.b16 %v222
      %v378 = vunpack.c.l.b16 %v223
      %v379 = vunpack.c.l.b16 %v224
      %v380 = vunpack.c.l.b16 %v225
      %v381 = vunpack.c.l.b16 %v226
      %v382 = vunpack.c.l.b16 %v227
      %v383 = vunpack.c.l.b16 %v228
      %v384 = vpack.c.b16 %v369, %v368
      %v385 = vpack.c.b16 %v371, %v370
      %v386 = vpack.c.b16 %v373, %v372
      %v387 = vpack.c.b16 %v375, %v374
      %v388 = vpack.c.b16 %v377, %v376
      %v389 = vpack.c.b16 %v379, %v378
      %v390 = vpack.c.b16 %v381, %v380
      %v391 = vpack.c.b16 %v383, %v382
      %400 = vmatpush.bf16.msra.mxu0 %v391
      %401 = vmatpush.bf16.msra.mxu0 %v390
      %402 = vmatpush.bf16.msra.mxu0 %v389
      %403 = vmatpush.bf16.msra.mxu0 %v388
      %404 = vmatpush.bf16.msra.mxu0 %v387
      %405 = vmatpush.bf16.msra.mxu0 %v386
      %406 = vmatpush.bf16.msra.mxu0 %v385
      %407 = vmatpush.bf16.msra.mxu0 %v384
      %408 = vmatmul.bf16.gmra.mxu0 %v257
      %v409 = vpop.f32.mrf.mxu0
      %v410 = vadd.f32 %v341, %v409
      %v411 = vpop.f32.mrf.mxu0
      %v412 = vadd.f32 %v343, %v411
      %413 = vmatmul.bf16.gmra.mxu0 %v258
      %v414 = vpop.f32.mrf.mxu0
      %v415 = vadd.f32 %v346, %v414
      %v416 = vpop.f32.mrf.mxu0
      %v417 = vadd.f32 %v348, %v416
      %418 = vdwg.mxu0
      %v419 = vld [vmem:[%s198] sm:$0xe]
      %s420 = scalar_lea.vmem %s1, 128
      %v421 = vld [vmem:[%s420] sm:$0xf]
      %v422 = vld [vmem:[%s420 + $0x4] sm:$0xf]
      %v423 = vld [vmem:[%s420 + $0x8] sm:$0xf]
      %v424 = vld [vmem:[%s420 + $0xc] sm:$0xf]
      %v425 = vld [vmem:[%s420 + $0x10] sm:$0xf]
      %v426 = vld [vmem:[%s420 + $0x14] sm:$0xf]
      %v427 = vld [vmem:[%s420 + $0x18] sm:$0xf]
      %v428 = vld [vmem:[%s420 + $0x1c] sm:$0xf]
      %v429 = vld [vmem:[%s420 + $0x20] sm:$0xf]
      %v430 = vld [vmem:[%s420 + $0x24] sm:$0xf]
      %v431 = vld [vmem:[%s420 + $0x28] sm:$0xf]
      %v432 = vld [vmem:[%s420 + $0x2c] sm:$0xf]
      %v433 = vld [vmem:[%s420 + $0x30] sm:$0xf]
      %v434 = vld [vmem:[%s420 + $0x34] sm:$0xf]
      %v435 = vld [vmem:[%s420 + $0x38] sm:$0xf]
      %v436 = vld [vmem:[%s420 + $0x3c] sm:$0xf]
      %v438 = vunpack.c.l.b16 %v419
      %v439 = vpack.c.b16 %v253, %v438
      %vm440 = vcmask 1046528
      %v441 = vrot.slane %v439, 1
      %v442 = vrot.slane %v258, 1
      %v443 = vsel %vm440, %v441, %v442
      %v444 = vrot.slane %v259, 1
      %v445 = vsel %vm440, %v442, %v444
      %v464 = vunpack.c.l.b16 %v421
      %v465 = vunpack.c.l.b16 %v422
      %v466 = vunpack.c.l.b16 %v423
      %v467 = vunpack.c.l.b16 %v424
      %v468 = vunpack.c.l.b16 %v425
      %v469 = vunpack.c.l.b16 %v426
      %v470 = vunpack.c.l.b16 %v427
      %v471 = vunpack.c.l.b16 %v428
      %v472 = vunpack.c.l.b16 %v429
      %v473 = vunpack.c.l.b16 %v430
      %v474 = vunpack.c.l.b16 %v431
      %v475 = vunpack.c.l.b16 %v432
      %v476 = vunpack.c.l.b16 %v433
      %v477 = vunpack.c.l.b16 %v434
      %v478 = vunpack.c.l.b16 %v435
      %v479 = vunpack.c.l.b16 %v436
      %v480 = vpack.c.b16 %v465, %v464
      %v481 = vpack.c.b16 %v467, %v466
      %v482 = vpack.c.b16 %v469, %v468
      %v483 = vpack.c.b16 %v471, %v470
      %v484 = vpack.c.b16 %v473, %v472
      %v485 = vpack.c.b16 %v475, %v474
      %v486 = vpack.c.b16 %v477, %v476
      %v487 = vpack.c.b16 %v479, %v478
      %496 = vmatpush.bf16.msra.mxu0 %v487
      %497 = vmatpush.bf16.msra.mxu0 %v486
      %498 = vmatpush.bf16.msra.mxu0 %v485
      %499 = vmatpush.bf16.msra.mxu0 %v484
      %500 = vmatpush.bf16.msra.mxu0 %v483
      %501 = vmatpush.bf16.msra.mxu0 %v482
      %502 = vmatpush.bf16.msra.mxu0 %v481
      %503 = vmatpush.bf16.msra.mxu0 %v480
      %504 = vmatmul.bf16.gmra.mxu0 %v443
      %v505 = vpop.f32.mrf.mxu0
      %v506 = vadd.f32 0.0, %v505
      %v507 = vpop.f32.mrf.mxu0
      %v508 = vadd.f32 0.0, %v507
      %509 = vmatmul.bf16.gmra.mxu0 %v445
      %v510 = vpop.f32.mrf.mxu0
      %v511 = vadd.f32 0.0, %v510
      %v512 = vpop.f32.mrf.mxu0
      %v513 = vadd.f32 0.0, %v512
      %514 = vdwg.mxu0
      %v515 = vadd.f32 %v410, %v506
      %v516 = vadd.f32 %v412, %v508
      %v517 = vadd.f32 %v415, %v511
      %v518 = vadd.f32 %v417, %v513
      %v519 = vld [vmem:[%s198 + $0x10] sm:$0x3]
      %s520 = scalar_lea.vmem %s1, 192
      %v521 = vld [vmem:[%s520] sm:$0xf]
      %v522 = vld [vmem:[%s520 + $0x4] sm:$0xf]
      %v523 = vld [vmem:[%s520 + $0x8] sm:$0xf]
      %v524 = vld [vmem:[%s520 + $0xc] sm:$0xf]
      %v525 = vld [vmem:[%s520 + $0x10] sm:$0xf]
      %v526 = vld [vmem:[%s520 + $0x14] sm:$0xf]
      %v527 = vld [vmem:[%s520 + $0x18] sm:$0xf]
      %v528 = vld [vmem:[%s520 + $0x1c] sm:$0xf]
      %v529 = vld [vmem:[%s520 + $0x20] sm:$0xf]
      %v530 = vld [vmem:[%s520 + $0x24] sm:$0xf]
      %v531 = vld [vmem:[%s520 + $0x28] sm:$0xf]
      %v532 = vld [vmem:[%s520 + $0x2c] sm:$0xf]
      %v533 = vld [vmem:[%s520 + $0x30] sm:$0xf]
      %v534 = vld [vmem:[%s520 + $0x34] sm:$0xf]
      %v535 = vld [vmem:[%s520 + $0x38] sm:$0xf]
      %v536 = vld [vmem:[%s520 + $0x3c] sm:$0xf]
      %v538 = vunpack.c.l.b16 %v519
      %v539 = vpack.c.b16 %v538, %v538
      %vm540 = vsmask.f32 6400
      %v542 = vshrl.u32 %v439, 16
      %v544 = vrot.slane %v542, 1
      %v545 = vshll.u32 %v439, 16
      %v547 = vrot.slane %v545, 2
      %v548 = vor.u32 %v544, %v547
      %v549 = vrot.slane %v273, 1
      %v550 = vrot.slane %v269, 2
      %v551 = vor.u32 %v549, %v550
      %v552 = vsel %vm540, %v548, %v551
      %v554 = vshrl.u32 %v539, 16
      %v556 = vrot.slane %v554, 1
      %v557 = vshll.u32 %v539, 16
      %v559 = vrot.slane %v557, 2
      %v560 = vor.u32 %v556, %v559
      %v561 = vsel %vm540, %v551, %v560
      %v580 = vunpack.c.l.b16 %v521
      %v581 = vunpack.c.l.b16 %v522
      %v582 = vunpack.c.l.b16 %v523
      %v583 = vunpack.c.l.b16 %v524
      %v584 = vunpack.c.l.b16 %v525
      %v585 = vunpack.c.l.b16 %v526
      %v586 = vunpack.c.l.b16 %v527
      %v587 = vunpack.c.l.b16 %v528
      %v588 = vunpack.c.l.b16 %v529
      %v589 = vunpack.c.l.b16 %v530
      %v590 = vunpack.c.l.b16 %v531
      %v591 = vunpack.c.l.b16 %v532
      %v592 = vunpack.c.l.b16 %v533
      %v593 = vunpack.c.l.b16 %v534
      %v594 = vunpack.c.l.b16 %v535
      %v595 = vunpack.c.l.b16 %v536
      %v596 = vpack.c.b16 %v581, %v580
      %v597 = vpack.c.b16 %v583, %v582
      %v598 = vpack.c.b16 %v585, %v584
      %v599 = vpack.c.b16 %v587, %v586
      %v600 = vpack.c.b16 %v589, %v588
      %v601 = vpack.c.b16 %v591, %v590
      %v602 = vpack.c.b16 %v593, %v592
      %v603 = vpack.c.b16 %v595, %v594
      %612 = vmatpush.bf16.msra.mxu0 %v603
      %613 = vmatpush.bf16.msra.mxu0 %v602
      %614 = vmatpush.bf16.msra.mxu0 %v601
      %615 = vmatpush.bf16.msra.mxu0 %v600
      %616 = vmatpush.bf16.msra.mxu0 %v599
      %617 = vmatpush.bf16.msra.mxu0 %v598
      %618 = vmatpush.bf16.msra.mxu0 %v597
      %619 = vmatpush.bf16.msra.mxu0 %v596
      %620 = vmatmul.bf16.gmra.mxu0 %v552
      %v621 = vpop.f32.mrf.mxu0
      %v622 = vadd.f32 0.0, %v621
      %v623 = vpop.f32.mrf.mxu0
      %v624 = vadd.f32 0.0, %v623
      %625 = vmatmul.bf16.gmra.mxu0 %v561
      %v626 = vpop.f32.mrf.mxu0
      %v627 = vadd.f32 0.0, %v626
      %v628 = vpop.f32.mrf.mxu0
      %v629 = vadd.f32 0.0, %v628
      %630 = vdwg.mxu0
      %v631 = vadd.f32 %v515, %v622
      %v632 = vadd.f32 %v516, %v624
      %v633 = vadd.f32 %v517, %v627
      %v634 = vadd.f32 %v518, %v629
      %v635 = vld [vmem:[%s198] sm:$0xc]
      %s636 = scalar_lea.vmem %s1, 256
      %v637 = vld [vmem:[%s636] sm:$0xf]
      %v638 = vld [vmem:[%s636 + $0x4] sm:$0xf]
      %v639 = vld [vmem:[%s636 + $0x8] sm:$0xf]
      %v640 = vld [vmem:[%s636 + $0xc] sm:$0xf]
      %v641 = vld [vmem:[%s636 + $0x10] sm:$0xf]
      %v642 = vld [vmem:[%s636 + $0x14] sm:$0xf]
      %v643 = vld [vmem:[%s636 + $0x18] sm:$0xf]
      %v644 = vld [vmem:[%s636 + $0x1c] sm:$0xf]
      %v645 = vld [vmem:[%s636 + $0x20] sm:$0xf]
      %v646 = vld [vmem:[%s636 + $0x24] sm:$0xf]
      %v647 = vld [vmem:[%s636 + $0x28] sm:$0xf]
      %v648 = vld [vmem:[%s636 + $0x2c] sm:$0xf]
      %v649 = vld [vmem:[%s636 + $0x30] sm:$0xf]
      %v650 = vld [vmem:[%s636 + $0x34] sm:$0xf]
      %v651 = vld [vmem:[%s636 + $0x38] sm:$0xf]
      %v652 = vld [vmem:[%s636 + $0x3c] sm:$0xf]
      %v654 = vunpack.c.l.b16 %v635
      %v655 = vpack.c.b16 %v253, %v654
      %vm656 = vcmask 1045504
      %v657 = vrot.slane %v655, 2
      %v658 = vrot.slane %v258, 2
      %v659 = vsel %vm656, %v657, %v658
      %v660 = vrot.slane %v539, 2
      %v661 = vsel %vm656, %v658, %v660
      %v680 = vunpack.c.l.b16 %v637
      %v681 = vunpack.c.l.b16 %v638
      %v682 = vunpack.c.l.b16 %v639
      %v683 = vunpack.c.l.b16 %v640
      %v684 = vunpack.c.l.b16 %v641
      %v685 = vunpack.c.l.b16 %v642
      %v686 = vunpack.c.l.b16 %v643
      %v687 = vunpack.c.l.b16 %v644
      %v688 = vunpack.c.l.b16 %v645
      %v689 = vunpack.c.l.b16 %v646
      %v690 = vunpack.c.l.b16 %v647
      %v691 = vunpack.c.l.b16 %v648
      %v692 = vunpack.c.l.b16 %v649
      %v693 = vunpack.c.l.b16 %v650
      %v694 = vunpack.c.l.b16 %v651
      %v695 = vunpack.c.l.b16 %v652
      %v696 = vpack.c.b16 %v681, %v680
      %v697 = vpack.c.b16 %v683, %v682
      %v698 = vpack.c.b16 %v685, %v684
      %v699 = vpack.c.b16 %v687, %v686
      %v700 = vpack.c.b16 %v689, %v688
      %v701 = vpack.c.b16 %v691, %v690
      %v702 = vpack.c.b16 %v693, %v692
      %v703 = vpack.c.b16 %v695, %v694
      %712 = vmatpush.bf16.msra.mxu0 %v703
      %713 = vmatpush.bf16.msra.mxu0 %v702
      %714 = vmatpush.bf16.msra.mxu0 %v701
      %715 = vmatpush.bf16.msra.mxu0 %v700
      %716 = vmatpush.bf16.msra.mxu0 %v699
      %717 = vmatpush.bf16.msra.mxu0 %v698
      %718 = vmatpush.bf16.msra.mxu0 %v697
      %719 = vmatpush.bf16.msra.mxu0 %v696
      %720 = vmatmul.bf16.gmra.mxu0 %v659
      %v721 = vpop.f32.mrf.mxu0
      %v722 = vadd.f32 0.0, %v721
      %v723 = vpop.f32.mrf.mxu0
      %v724 = vadd.f32 0.0, %v723
      %725 = vmatmul.bf16.gmra.mxu0 %v661
      %v726 = vpop.f32.mrf.mxu0
      %v727 = vadd.f32 0.0, %v726
      %v728 = vpop.f32.mrf.mxu0
      %v729 = vadd.f32 0.0, %v728
      %730 = vdwg.mxu0
      %v731 = vadd.f32 %v631, %v722
      %v732 = vadd.f32 %v632, %v724
      %v733 = vadd.f32 %v633, %v727
      %v734 = vadd.f32 %v634, %v729
      %v735 = vld [vmem:[%s198 + $0x10] sm:$0x7]
      %s736 = scalar_lea.vmem %s1, 320
      %v737 = vld [vmem:[%s736] sm:$0xf]
      %v738 = vld [vmem:[%s736 + $0x4] sm:$0xf]
      %v739 = vld [vmem:[%s736 + $0x8] sm:$0xf]
      %v740 = vld [vmem:[%s736 + $0xc] sm:$0xf]
      %v741 = vld [vmem:[%s736 + $0x10] sm:$0xf]
      %v742 = vld [vmem:[%s736 + $0x14] sm:$0xf]
      %v743 = vld [vmem:[%s736 + $0x18] sm:$0xf]
      %v744 = vld [vmem:[%s736 + $0x1c] sm:$0xf]
      %v745 = vld [vmem:[%s736 + $0x20] sm:$0xf]
      %v746 = vld [vmem:[%s736 + $0x24] sm:$0xf]
      %v747 = vld [vmem:[%s736 + $0x28] sm:$0xf]
      %v748 = vld [vmem:[%s736 + $0x2c] sm:$0xf]
      %v749 = vld [vmem:[%s736 + $0x30] sm:$0xf]
      %v750 = vld [vmem:[%s736 + $0x34] sm:$0xf]
      %v751 = vld [vmem:[%s736 + $0x38] sm:$0xf]
      %v752 = vld [vmem:[%s736 + $0x3c] sm:$0xf]
      %v754 = vunpack.c.l.b16 %v735
      %v755 = vpack.c.b16 %v754, %v754
      %vm756 = vsmask.f32 5376
      %v758 = vshrl.u32 %v655, 16
      %v760 = vrot.slane %v758, 2
      %v761 = vshll.u32 %v655, 16
      %v763 = vrot.slane %v761, 3
      %v764 = vor.u32 %v760, %v763
      %v765 = vrot.slane %v273, 2
      %v766 = vrot.slane %v269, 3
      %v767 = vor.u32 %v765, %v766
      %v768 = vsel %vm756, %v764, %v767
      %v770 = vshrl.u32 %v755, 16
      %v772 = vrot.slane %v770, 2
      %v773 = vshll.u32 %v755, 16
      %v775 = vrot.slane %v773, 3
      %v776 = vor.u32 %v772, %v775
      %v777 = vsel %vm756, %v767, %v776
      %v796 = vunpack.c.l.b16 %v737
      %v797 = vunpack.c.l.b16 %v738
      %v798 = vunpack.c.l.b16 %v739
      %v799 = vunpack.c.l.b16 %v740
      %v800 = vunpack.c.l.b16 %v741
      %v801 = vunpack.c.l.b16 %v742
      %v802 = vunpack.c.l.b16 %v743
      %v803 = vunpack.c.l.b16 %v744
      %v804 = vunpack.c.l.b16 %v745
      %v805 = vunpack.c.l.b16 %v746
      %v806 = vunpack.c.l.b16 %v747
      %v807 = vunpack.c.l.b16 %v748
      %v808 = vunpack.c.l.b16 %v749
      %v809 = vunpack.c.l.b16 %v750
      %v810 = vunpack.c.l.b16 %v751
      %v811 = vunpack.c.l.b16 %v752
      %v812 = vpack.c.b16 %v797, %v796
      %v813 = vpack.c.b16 %v799, %v798
      %v814 = vpack.c.b16 %v801, %v800
      %v815 = vpack.c.b16 %v803, %v802
      %v816 = vpack.c.b16 %v805, %v804
      %v817 = vpack.c.b16 %v807, %v806
      %v818 = vpack.c.b16 %v809, %v808
      %v819 = vpack.c.b16 %v811, %v810
      %828 = vmatpush.bf16.msra.mxu0 %v819
      %829 = vmatpush.bf16.msra.mxu0 %v818
      %830 = vmatpush.bf16.msra.mxu0 %v817
      %831 = vmatpush.bf16.msra.mxu0 %v816
      %832 = vmatpush.bf16.msra.mxu0 %v815
      %833 = vmatpush.bf16.msra.mxu0 %v814
      %834 = vmatpush.bf16.msra.mxu0 %v813
      %835 = vmatpush.bf16.msra.mxu0 %v812
      %836 = vmatmul.bf16.gmra.mxu0 %v768
      %v837 = vpop.f32.mrf.mxu0
      %v838 = vadd.f32 0.0, %v837
      %v839 = vpop.f32.mrf.mxu0
      %v840 = vadd.f32 0.0, %v839
      %841 = vmatmul.bf16.gmra.mxu0 %v777
      %v842 = vpop.f32.mrf.mxu0
      %v843 = vadd.f32 0.0, %v842
      %v844 = vpop.f32.mrf.mxu0
      %v845 = vadd.f32 0.0, %v844
      %846 = vdwg.mxu0
      %v847 = vadd.f32 %v731, %v838
      %v848 = vadd.f32 %v732, %v840
      %v849 = vadd.f32 %v733, %v843
      %v850 = vadd.f32 %v734, %v845
      %v851 = vld [vmem:[%s198] sm:$0x8]
      %s852 = scalar_lea.vmem %s1, 384
      %v853 = vld [vmem:[%s852] sm:$0xf]
      %v854 = vld [vmem:[%s852 + $0x4] sm:$0xf]
      %v855 = vld [vmem:[%s852 + $0x8] sm:$0xf]
      %v856 = vld [vmem:[%s852 + $0xc] sm:$0xf]
      %v857 = vld [vmem:[%s852 + $0x10] sm:$0xf]
      %v858 = vld [vmem:[%s852 + $0x14] sm:$0xf]
      %v859 = vld [vmem:[%s852 + $0x18] sm:$0xf]
      %v860 = vld [vmem:[%s852 + $0x1c] sm:$0xf]
      %v861 = vld [vmem:[%s852 + $0x20] sm:$0xf]
      %v862 = vld [vmem:[%s852 + $0x24] sm:$0xf]
      %v863 = vld [vmem:[%s852 + $0x28] sm:$0xf]
      %v864 = vld [vmem:[%s852 + $0x2c] sm:$0xf]
      %v865 = vld [vmem:[%s852 + $0x30] sm:$0xf]
      %v866 = vld [vmem:[%s852 + $0x34] sm:$0xf]
      %v867 = vld [vmem:[%s852 + $0x38] sm:$0xf]
      %v868 = vld [vmem:[%s852 + $0x3c] sm:$0xf]
      %v870 = vunpack.c.l.b16 %v851
      %v871 = vpack.c.b16 %v253, %v870
      %vm872 = vcmask 1044480
      %v873 = vrot.slane %v871, 3
      %v874 = vrot.slane %v258, 3
      %v875 = vsel %vm872, %v873, %v874
      %v876 = vrot.slane %v755, 3
      %v877 = vsel %vm872, %v874, %v876
      %v896 = vunpack.c.l.b16 %v853
      %v897 = vunpack.c.l.b16 %v854
      %v898 = vunpack.c.l.b16 %v855
      %v899 = vunpack.c.l.b16 %v856
      %v900 = vunpack.c.l.b16 %v857
      %v901 = vunpack.c.l.b16 %v858
      %v902 = vunpack.c.l.b16 %v859
      %v903 = vunpack.c.l.b16 %v860
      %v904 = vunpack.c.l.b16 %v861
      %v905 = vunpack.c.l.b16 %v862
      %v906 = vunpack.c.l.b16 %v863
      %v907 = vunpack.c.l.b16 %v864
      %v908 = vunpack.c.l.b16 %v865
      %v909 = vunpack.c.l.b16 %v866
      %v910 = vunpack.c.l.b16 %v867
      %v911 = vunpack.c.l.b16 %v868
      %v912 = vpack.c.b16 %v897, %v896
      %v913 = vpack.c.b16 %v899, %v898
      %v914 = vpack.c.b16 %v901, %v900
      %v915 = vpack.c.b16 %v903, %v902
      %v916 = vpack.c.b16 %v905, %v904
      %v917 = vpack.c.b16 %v907, %v906
      %v918 = vpack.c.b16 %v909, %v908
      %v919 = vpack.c.b16 %v911, %v910
      %928 = vmatpush.bf16.msra.mxu0 %v919
      %929 = vmatpush.bf16.msra.mxu0 %v918
      %930 = vmatpush.bf16.msra.mxu0 %v917
      %931 = vmatpush.bf16.msra.mxu0 %v916
      %932 = vmatpush.bf16.msra.mxu0 %v915
      %933 = vmatpush.bf16.msra.mxu0 %v914
      %934 = vmatpush.bf16.msra.mxu0 %v913
      %935 = vmatpush.bf16.msra.mxu0 %v912
      %936 = vmatmul.bf16.gmra.mxu0 %v875
      %v937 = vpop.f32.mrf.mxu0
      %v938 = vadd.f32 0.0, %v937
      %v939 = vpop.f32.mrf.mxu0
      %v940 = vadd.f32 0.0, %v939
      %941 = vmatmul.bf16.gmra.mxu0 %v877
      %v942 = vpop.f32.mrf.mxu0
      %v943 = vadd.f32 0.0, %v942
      %v944 = vpop.f32.mrf.mxu0
      %v945 = vadd.f32 0.0, %v944
      %946 = vdwg.mxu0
      %v947 = vadd.f32 %v847, %v938
      %v948 = vadd.f32 %v848, %v940
      %v949 = vadd.f32 %v849, %v943
      %v950 = vadd.f32 %v850, %v945
      %v951 = vld [vmem:[%s198 + $0x10] sm:$0xf]
      %s952 = scalar_lea.vmem %s1, 448
      %v953 = vld [vmem:[%s952] sm:$0xf]
      %v954 = vld [vmem:[%s952 + $0x4] sm:$0xf]
      %v955 = vld [vmem:[%s952 + $0x8] sm:$0xf]
      %v956 = vld [vmem:[%s952 + $0xc] sm:$0xf]
      %v957 = vld [vmem:[%s952 + $0x10] sm:$0xf]
      %v958 = vld [vmem:[%s952 + $0x14] sm:$0xf]
      %v959 = vld [vmem:[%s952 + $0x18] sm:$0xf]
      %v960 = vld [vmem:[%s952 + $0x1c] sm:$0xf]
      %v961 = vld [vmem:[%s952 + $0x20] sm:$0xf]
      %v962 = vld [vmem:[%s952 + $0x24] sm:$0xf]
      %v963 = vld [vmem:[%s952 + $0x28] sm:$0xf]
      %v964 = vld [vmem:[%s952 + $0x2c] sm:$0xf]
      %v965 = vld [vmem:[%s952 + $0x30] sm:$0xf]
      %v966 = vld [vmem:[%s952 + $0x34] sm:$0xf]
      %v967 = vld [vmem:[%s952 + $0x38] sm:$0xf]
      %v968 = vld [vmem:[%s952 + $0x3c] sm:$0xf]
      %v970 = vunpack.c.l.b16 %v951
      %v971 = vpack.c.b16 %v970, %v970
      %vm972 = vsmask.f32 4352
      %v974 = vshrl.u32 %v871, 16
      %v976 = vrot.slane %v974, 3
      %v977 = vshll.u32 %v871, 16
      %v979 = vrot.slane %v977, 4
      %v980 = vor.u32 %v976, %v979
      %v981 = vrot.slane %v273, 3
      %v982 = vrot.slane %v269, 4
      %v983 = vor.u32 %v981, %v982
      %v984 = vsel %vm972, %v980, %v983
      %v986 = vshrl.u32 %v971, 16
      %v988 = vrot.slane %v986, 3
      %v989 = vshll.u32 %v971, 16
      %v991 = vrot.slane %v989, 4
      %v992 = vor.u32 %v988, %v991
      %v993 = vsel %vm972, %v983, %v992
      %v1012 = vunpack.c.l.b16 %v953
      %v1013 = vunpack.c.l.b16 %v954
      %v1014 = vunpack.c.l.b16 %v955
      %v1015 = vunpack.c.l.b16 %v956
      %v1016 = vunpack.c.l.b16 %v957
      %v1017 = vunpack.c.l.b16 %v958
      %v1018 = vunpack.c.l.b16 %v959
      %v1019 = vunpack.c.l.b16 %v960
      %v1020 = vunpack.c.l.b16 %v961
      %v1021 = vunpack.c.l.b16 %v962
      %v1022 = vunpack.c.l.b16 %v963
      %v1023 = vunpack.c.l.b16 %v964
      %v1024 = vunpack.c.l.b16 %v965
      %v1025 = vunpack.c.l.b16 %v966
      %v1026 = vunpack.c.l.b16 %v967
      %v1027 = vunpack.c.l.b16 %v968
      %v1028 = vpack.c.b16 %v1013, %v1012
      %v1029 = vpack.c.b16 %v1015, %v1014
      %v1030 = vpack.c.b16 %v1017, %v1016
      %v1031 = vpack.c.b16 %v1019, %v1018
      %v1032 = vpack.c.b16 %v1021, %v1020
      %v1033 = vpack.c.b16 %v1023, %v1022
      %v1034 = vpack.c.b16 %v1025, %v1024
      %v1035 = vpack.c.b16 %v1027, %v1026
      %1044 = vmatpush.bf16.msra.mxu0 %v1035
      %1045 = vmatpush.bf16.msra.mxu0 %v1034
      %1046 = vmatpush.bf16.msra.mxu0 %v1033
      %1047 = vmatpush.bf16.msra.mxu0 %v1032
      %1048 = vmatpush.bf16.msra.mxu0 %v1031
      %1049 = vmatpush.bf16.msra.mxu0 %v1030
      %1050 = vmatpush.bf16.msra.mxu0 %v1029
      %1051 = vmatpush.bf16.msra.mxu0 %v1028
      %1052 = vmatmul.bf16.gmra.mxu0 %v984
      %v1053 = vpop.f32.mrf.mxu0
      %v1054 = vadd.f32 0.0, %v1053
      %v1055 = vpop.f32.mrf.mxu0
      %v1056 = vadd.f32 0.0, %v1055
      %1057 = vmatmul.bf16.gmra.mxu0 %v993
      %v1058 = vpop.f32.mrf.mxu0
      %v1059 = vadd.f32 0.0, %v1058
      %v1060 = vpop.f32.mrf.mxu0
      %v1061 = vadd.f32 0.0, %v1060
      %1062 = vdwg.mxu0
      %v1063 = vadd.f32 %v947, %v1054
      %v1064 = vadd.f32 %v948, %v1056
      %v1065 = vadd.f32 %v949, %v1059
      %v1066 = vadd.f32 %v950, %v1061
      %s1067 = scalar_lea.vmem %s1, 512
      %v1068 = vld [vmem:[%s1067] sm:$0xf]
      %v1069 = vld [vmem:[%s1067 + $0x4] sm:$0xf]
      %v1070 = vld [vmem:[%s1067 + $0x8] sm:$0xf]
      %v1071 = vld [vmem:[%s1067 + $0xc] sm:$0xf]
      %v1072 = vld [vmem:[%s1067 + $0x10] sm:$0xf]
      %v1073 = vld [vmem:[%s1067 + $0x14] sm:$0xf]
      %v1074 = vld [vmem:[%s1067 + $0x18] sm:$0xf]
      %v1075 = vld [vmem:[%s1067 + $0x1c] sm:$0xf]
      %v1076 = vld [vmem:[%s1067 + $0x20] sm:$0xf]
      %v1077 = vld [vmem:[%s1067 + $0x24] sm:$0xf]
      %v1078 = vld [vmem:[%s1067 + $0x28] sm:$0xf]
      %v1079 = vld [vmem:[%s1067 + $0x2c] sm:$0xf]
      %v1080 = vld [vmem:[%s1067 + $0x30] sm:$0xf]
      %v1081 = vld [vmem:[%s1067 + $0x34] sm:$0xf]
      %v1082 = vld [vmem:[%s1067 + $0x38] sm:$0xf]
      %v1083 = vld [vmem:[%s1067 + $0x3c] sm:$0xf]
      %v1084 = vpack.c.b16 %v254, %v253
      %v1085 = vpack.c.b16 %v970, %v255
      %v1104 = vunpack.c.l.b16 %v1068
      %v1105 = vunpack.c.l.b16 %v1069
      %v1106 = vunpack.c.l.b16 %v1070
      %v1107 = vunpack.c.l.b16 %v1071
      %v1108 = vunpack.c.l.b16 %v1072
      %v1109 = vunpack.c.l.b16 %v1073
      %v1110 = vunpack.c.l.b16 %v1074
      %v1111 = vunpack.c.l.b16 %v1075
      %v1112 = vunpack.c.l.b16 %v1076
      %v1113 = vunpack.c.l.b16 %v1077
      %v1114 = vunpack.c.l.b16 %v1078
      %v1115 = vunpack.c.l.b16 %v1079
      %v1116 = vunpack.c.l.b16 %v1080
      %v1117 = vunpack.c.l.b16 %v1081
      %v1118 = vunpack.c.l.b16 %v1082
      %v1119 = vunpack.c.l.b16 %v1083
      %v1120 = vpack.c.b16 %v1105, %v1104
      %v1121 = vpack.c.b16 %v1107, %v1106
      %v1122 = vpack.c.b16 %v1109, %v1108
      %v1123 = vpack.c.b16 %v1111, %v1110
      %v1124 = vpack.c.b16 %v1113, %v1112
      %v1125 = vpack.c.b16 %v1115, %v1114
      %v1126 = vpack.c.b16 %v1117, %v1116
      %v1127 = vpack.c.b16 %v1119, %v1118
      %1136 = vmatpush.bf16.msra.mxu0 %v1127
      %1137 = vmatpush.bf16.msra.mxu0 %v1126
      %1138 = vmatpush.bf16.msra.mxu0 %v1125
      %1139 = vmatpush.bf16.msra.mxu0 %v1124
      %1140 = vmatpush.bf16.msra.mxu0 %v1123
      %1141 = vmatpush.bf16.msra.mxu0 %v1122
      %1142 = vmatpush.bf16.msra.mxu0 %v1121
      %1143 = vmatpush.bf16.msra.mxu0 %v1120
      %1144 = vmatmul.bf16.gmra.mxu0 %v1084
      %v1145 = vpop.f32.mrf.mxu0
      %v1146 = vadd.f32 0.0, %v1145
      %v1147 = vpop.f32.mrf.mxu0
      %v1148 = vadd.f32 0.0, %v1147
      %1149 = vmatmul.bf16.gmra.mxu0 %v1085
      %v1150 = vpop.f32.mrf.mxu0
      %v1151 = vadd.f32 0.0, %v1150
      %v1152 = vpop.f32.mrf.mxu0
      %v1153 = vadd.f32 0.0, %v1152
      %1154 = vdwg.mxu0
      %v1155 = vadd.f32 %v1063, %v1146
      %v1156 = vadd.f32 %v1064, %v1148
      %v1157 = vadd.f32 %v1065, %v1151
      %v1158 = vadd.f32 %v1066, %v1153
      %v1159 = vld [vmem:[%s198 + $0x4] sm:$0xf]
      %v1160 = vld [vmem:[%s198 + $0x8] sm:$0xf]
      %v1161 = vld [vmem:[%s198 + $0xc] sm:$0xf]
      %v1162 = vld [vmem:[%s198 + $0x10] sm:$0xf]
      %v1163 = vld [vmem:[%s198 + $0x14] sm:$0x1]
      %s1164 = scalar_lea.vmem %s1, 576
      %v1165 = vld [vmem:[%s1164] sm:$0xf]
      %v1166 = vld [vmem:[%s1164 + $0x4] sm:$0xf]
      %v1167 = vld [vmem:[%s1164 + $0x8] sm:$0xf]
      %v1168 = vld [vmem:[%s1164 + $0xc] sm:$0xf]
      %v1169 = vld [vmem:[%s1164 + $0x10] sm:$0xf]
      %v1170 = vld [vmem:[%s1164 + $0x14] sm:$0xf]
      %v1171 = vld [vmem:[%s1164 + $0x18] sm:$0xf]
      %v1172 = vld [vmem:[%s1164 + $0x1c] sm:$0xf]
      %v1173 = vld [vmem:[%s1164 + $0x20] sm:$0xf]
      %v1174 = vld [vmem:[%s1164 + $0x24] sm:$0xf]
      %v1175 = vld [vmem:[%s1164 + $0x28] sm:$0xf]
      %v1176 = vld [vmem:[%s1164 + $0x2c] sm:$0xf]
      %v1177 = vld [vmem:[%s1164 + $0x30] sm:$0xf]
      %v1178 = vld [vmem:[%s1164 + $0x34] sm:$0xf]
      %v1179 = vld [vmem:[%s1164 + $0x38] sm:$0xf]
      %v1180 = vld [vmem:[%s1164 + $0x3c] sm:$0xf]
      %v1186 = vunpack.c.l.b16 %v1159
      %v1187 = vunpack.c.l.b16 %v1160
      %v1188 = vunpack.c.l.b16 %v1161
      %v1189 = vunpack.c.l.b16 %v1162
      %v1190 = vunpack.c.l.b16 %v1163
      %v1191 = vpack.c.b16 %v1187, %v1186
      %v1192 = vpack.c.b16 %v1189, %v1188
      %v1193 = vpack.c.b16 %v1190, %v1190
      %v1195 = vshrl.u32 %v1191, 16
      %v1197 = vshll.u32 %v1191, 16
      %v1199 = vrot.slane %v1197, 1
      %v1200 = vor.u32 %v1195, %v1199
      %v1202 = vshll.u32 %v1192, 16
      %v1204 = vrot.slane %v1202, 1
      %v1205 = vsel %vm260, %v1200, %v1204
      %v1206 = vshrl.u32 %v1192, 16
      %v1208 = vor.u32 %v1206, %v1204
      %v1210 = vshll.u32 %v1193, 16
      %v1212 = vrot.slane %v1210, 1
      %v1213 = vsel %vm260, %v1208, %v1212
      %v1232 = vunpack.c.l.b16 %v1165
      %v1233 = vunpack.c.l.b16 %v1166
      %v1234 = vunpack.c.l.b16 %v1167
      %v1235 = vunpack.c.l.b16 %v1168
      %v1236 = vunpack.c.l.b16 %v1169
      %v1237 = vunpack.c.l.b16 %v1170
      %v1238 = vunpack.c.l.b16 %v1171
      %v1239 = vunpack.c.l.b16 %v1172
      %v1240 = vunpack.c.l.b16 %v1173
      %v1241 = vunpack.c.l.b16 %v1174
      %v1242 = vunpack.c.l.b16 %v1175
      %v1243 = vunpack.c.l.b16 %v1176
      %v1244 = vunpack.c.l.b16 %v1177
      %v1245 = vunpack.c.l.b16 %v1178
      %v1246 = vunpack.c.l.b16 %v1179
      %v1247 = vunpack.c.l.b16 %v1180
      %v1248 = vpack.c.b16 %v1233, %v1232
      %v1249 = vpack.c.b16 %v1235, %v1234
      %v1250 = vpack.c.b16 %v1237, %v1236
      %v1251 = vpack.c.b16 %v1239, %v1238
      %v1252 = vpack.c.b16 %v1241, %v1240
      %v1253 = vpack.c.b16 %v1243, %v1242
      %v1254 = vpack.c.b16 %v1245, %v1244
      %v1255 = vpack.c.b16 %v1247, %v1246
      %1264 = vmatpush.bf16.msra.mxu0 %v1255
      %1265 = vmatpush.bf16.msra.mxu0 %v1254
      %1266 = vmatpush.bf16.msra.mxu0 %v1253
      %1267 = vmatpush.bf16.msra.mxu0 %v1252
      %1268 = vmatpush.bf16.msra.mxu0 %v1251
      %1269 = vmatpush.bf16.msra.mxu0 %v1250
      %1270 = vmatpush.bf16.msra.mxu0 %v1249
      %1271 = vmatpush.bf16.msra.mxu0 %v1248
      %1272 = vmatmul.bf16.gmra.mxu0 %v1205
      %v1273 = vpop.f32.mrf.mxu0
      %v1274 = vadd.f32 0.0, %v1273
      %v1275 = vpop.f32.mrf.mxu0
      %v1276 = vadd.f32 0.0, %v1275
      %1277 = vmatmul.bf16.gmra.mxu0 %v1213
      %v1278 = vpop.f32.mrf.mxu0
      %v1279 = vadd.f32 0.0, %v1278
      %v1280 = vpop.f32.mrf.mxu0
      %v1281 = vadd.f32 0.0, %v1280
      %1282 = vdwg.mxu0
      %v1283 = vadd.f32 %v1155, %v1274
      %v1284 = vadd.f32 %v1156, %v1276
      %v1285 = vadd.f32 %v1157, %v1279
      %v1286 = vadd.f32 %v1158, %v1281
      %v1287 = vld [vmem:[%s198 + $0x4] sm:$0xe]
      %s1288 = scalar_lea.vmem %s1, 640
      %v1289 = vld [vmem:[%s1288] sm:$0xf]
      %v1290 = vld [vmem:[%s1288 + $0x4] sm:$0xf]
      %v1291 = vld [vmem:[%s1288 + $0x8] sm:$0xf]
      %v1292 = vld [vmem:[%s1288 + $0xc] sm:$0xf]
      %v1293 = vld [vmem:[%s1288 + $0x10] sm:$0xf]
      %v1294 = vld [vmem:[%s1288 + $0x14] sm:$0xf]
      %v1295 = vld [vmem:[%s1288 + $0x18] sm:$0xf]
      %v1296 = vld [vmem:[%s1288 + $0x1c] sm:$0xf]
      %v1297 = vld [vmem:[%s1288 + $0x20] sm:$0xf]
      %v1298 = vld [vmem:[%s1288 + $0x24] sm:$0xf]
      %v1299 = vld [vmem:[%s1288 + $0x28] sm:$0xf]
      %v1300 = vld [vmem:[%s1288 + $0x2c] sm:$0xf]
      %v1301 = vld [vmem:[%s1288 + $0x30] sm:$0xf]
      %v1302 = vld [vmem:[%s1288 + $0x34] sm:$0xf]
      %v1303 = vld [vmem:[%s1288 + $0x38] sm:$0xf]
      %v1304 = vld [vmem:[%s1288 + $0x3c] sm:$0xf]
      %v1306 = vunpack.c.l.b16 %v1287
      %v1307 = vpack.c.b16 %v1187, %v1306
      %v1308 = vrot.slane %v1307, 1
      %v1309 = vrot.slane %v1192, 1
      %v1310 = vsel %vm440, %v1308, %v1309
      %v1311 = vrot.slane %v1193, 1
      %v1312 = vsel %vm440, %v1309, %v1311
      %v1331 = vunpack.c.l.b16 %v1289
      %v1332 = vunpack.c.l.b16 %v1290
      %v1333 = vunpack.c.l.b16 %v1291
      %v1334 = vunpack.c.l.b16 %v1292
      %v1335 = vunpack.c.l.b16 %v1293
      %v1336 = vunpack.c.l.b16 %v1294
      %v1337 = vunpack.c.l.b16 %v1295
      %v1338 = vunpack.c.l.b16 %v1296
      %v1339 = vunpack.c.l.b16 %v1297
      %v1340 = vunpack.c.l.b16 %v1298
      %v1341 = vunpack.c.l.b16 %v1299
      %v1342 = vunpack.c.l.b16 %v1300
      %v1343 = vunpack.c.l.b16 %v1301
      %v1344 = vunpack.c.l.b16 %v1302
      %v1345 = vunpack.c.l.b16 %v1303
      %v1346 = vunpack.c.l.b16 %v1304
      %v1347 = vpack.c.b16 %v1332, %v1331
      %v1348 = vpack.c.b16 %v1334, %v1333
      %v1349 = vpack.c.b16 %v1336, %v1335
      %v1350 = vpack.c.b16 %v1338, %v1337
      %v1351 = vpack.c.b16 %v1340, %v1339
      %v1352 = vpack.c.b16 %v1342, %v1341
      %v1353 = vpack.c.b16 %v1344, %v1343
      %v1354 = vpack.c.b16 %v1346, %v1345
      %1363 = vmatpush.bf16.msra.mxu0 %v1354
      %1364 = vmatpush.bf16.msra.mxu0 %v1353
      %1365 = vmatpush.bf16.msra.mxu0 %v1352
      %1366 = vmatpush.bf16.msra.mxu0 %v1351
      %1367 = vmatpush.bf16.msra.mxu0 %v1350
      %1368 = vmatpush.bf16.msra.mxu0 %v1349
      %1369 = vmatpush.bf16.msra.mxu0 %v1348
      %1370 = vmatpush.bf16.msra.mxu0 %v1347
      %1371 = vmatmul.bf16.gmra.mxu0 %v1310
      %v1372 = vpop.f32.mrf.mxu0
      %v1373 = vadd.f32 0.0, %v1372
      %v1374 = vpop.f32.mrf.mxu0
      %v1375 = vadd.f32 0.0, %v1374
      %1376 = vmatmul.bf16.gmra.mxu0 %v1312
      %v1377 = vpop.f32.mrf.mxu0
      %v1378 = vadd.f32 0.0, %v1377
      %v1379 = vpop.f32.mrf.mxu0
      %v1380 = vadd.f32 0.0, %v1379
      %1381 = vdwg.mxu0
      %v1382 = vadd.f32 %v1283, %v1373
      %v1383 = vadd.f32 %v1284, %v1375
      %v1384 = vadd.f32 %v1285, %v1378
      %v1385 = vadd.f32 %v1286, %v1380
      %v1386 = vld [vmem:[%s198 + $0x14] sm:$0x3]
      %s1387 = scalar_lea.vmem %s1, 704
      %v1388 = vld [vmem:[%s1387] sm:$0xf]
      %v1389 = vld [vmem:[%s1387 + $0x4] sm:$0xf]
      %v1390 = vld [vmem:[%s1387 + $0x8] sm:$0xf]
      %v1391 = vld [vmem:[%s1387 + $0xc] sm:$0xf]
      %v1392 = vld [vmem:[%s1387 + $0x10] sm:$0xf]
      %v1393 = vld [vmem:[%s1387 + $0x14] sm:$0xf]
      %v1394 = vld [vmem:[%s1387 + $0x18] sm:$0xf]
      %v1395 = vld [vmem:[%s1387 + $0x1c] sm:$0xf]
      %v1396 = vld [vmem:[%s1387 + $0x20] sm:$0xf]
      %v1397 = vld [vmem:[%s1387 + $0x24] sm:$0xf]
      %v1398 = vld [vmem:[%s1387 + $0x28] sm:$0xf]
      %v1399 = vld [vmem:[%s1387 + $0x2c] sm:$0xf]
      %v1400 = vld [vmem:[%s1387 + $0x30] sm:$0xf]
      %v1401 = vld [vmem:[%s1387 + $0x34] sm:$0xf]
      %v1402 = vld [vmem:[%s1387 + $0x38] sm:$0xf]
      %v1403 = vld [vmem:[%s1387 + $0x3c] sm:$0xf]
      %v1405 = vunpack.c.l.b16 %v1386
      %v1406 = vpack.c.b16 %v1405, %v1405
      %v1408 = vshrl.u32 %v1307, 16
      %v1410 = vrot.slane %v1408, 1
      %v1411 = vshll.u32 %v1307, 16
      %v1413 = vrot.slane %v1411, 2
      %v1414 = vor.u32 %v1410, %v1413
      %v1415 = vrot.slane %v1206, 1
      %v1416 = vrot.slane %v1202, 2
      %v1417 = vor.u32 %v1415, %v1416
      %v1418 = vsel %vm540, %v1414, %v1417
      %v1420 = vshrl.u32 %v1406, 16
      %v1422 = vrot.slane %v1420, 1
      %v1423 = vshll.u32 %v1406, 16
      %v1425 = vrot.slane %v1423, 2
      %v1426 = vor.u32 %v1422, %v1425
      %v1427 = vsel %vm540, %v1417, %v1426
      %v1446 = vunpack.c.l.b16 %v1388
      %v1447 = vunpack.c.l.b16 %v1389
      %v1448 = vunpack.c.l.b16 %v1390
      %v1449 = vunpack.c.l.b16 %v1391
      %v1450 = vunpack.c.l.b16 %v1392
      %v1451 = vunpack.c.l.b16 %v1393
      %v1452 = vunpack.c.l.b16 %v1394
      %v1453 = vunpack.c.l.b16 %v1395
      %v1454 = vunpack.c.l.b16 %v1396
      %v1455 = vunpack.c.l.b16 %v1397
      %v1456 = vunpack.c.l.b16 %v1398
      %v1457 = vunpack.c.l.b16 %v1399
      %v1458 = vunpack.c.l.b16 %v1400
      %v1459 = vunpack.c.l.b16 %v1401
      %v1460 = vunpack.c.l.b16 %v1402
      %v1461 = vunpack.c.l.b16 %v1403
      %v1462 = vpack.c.b16 %v1447, %v1446
      %v1463 = vpack.c.b16 %v1449, %v1448
      %v1464 = vpack.c.b16 %v1451, %v1450
      %v1465 = vpack.c.b16 %v1453, %v1452
      %v1466 = vpack.c.b16 %v1455, %v1454
      %v1467 = vpack.c.b16 %v1457, %v1456
      %v1468 = vpack.c.b16 %v1459, %v1458
      %v1469 = vpack.c.b16 %v1461, %v1460
      %1478 = vmatpush.bf16.msra.mxu0 %v1469
      %1479 = vmatpush.bf16.msra.mxu0 %v1468
      %1480 = vmatpush.bf16.msra.mxu0 %v1467
      %1481 = vmatpush.bf16.msra.mxu0 %v1466
      %1482 = vmatpush.bf16.msra.mxu0 %v1465
      %1483 = vmatpush.bf16.msra.mxu0 %v1464
      %1484 = vmatpush.bf16.msra.mxu0 %v1463
      %1485 = vmatpush.bf16.msra.mxu0 %v1462
      %1486 = vmatmul.bf16.gmra.mxu0 %v1418
      %v1487 = vpop.f32.mrf.mxu0
      %v1488 = vadd.f32 0.0, %v1487
      %v1489 = vpop.f32.mrf.mxu0
      %v1490 = vadd.f32 0.0, %v1489
      %1491 = vmatmul.bf16.gmra.mxu0 %v1427
      %v1492 = vpop.f32.mrf.mxu0
      %v1493 = vadd.f32 0.0, %v1492
      %v1494 = vpop.f32.mrf.mxu0
      %v1495 = vadd.f32 0.0, %v1494
      %1496 = vdwg.mxu0
      %v1497 = vadd.f32 %v1382, %v1488
      %v1498 = vadd.f32 %v1383, %v1490
      %v1499 = vadd.f32 %v1384, %v1493
      %v1500 = vadd.f32 %v1385, %v1495
      %v1501 = vld [vmem:[%s198 + $0x4] sm:$0xc]
      %s1502 = scalar_lea.vmem %s1, 768
      %v1503 = vld [vmem:[%s1502] sm:$0xf]
      %v1504 = vld [vmem:[%s1502 + $0x4] sm:$0xf]
      %v1505 = vld [vmem:[%s1502 + $0x8] sm:$0xf]
      %v1506 = vld [vmem:[%s1502 + $0xc] sm:$0xf]
      %v1507 = vld [vmem:[%s1502 + $0x10] sm:$0xf]
      %v1508 = vld [vmem:[%s1502 + $0x14] sm:$0xf]
      %v1509 = vld [vmem:[%s1502 + $0x18] sm:$0xf]
      %v1510 = vld [vmem:[%s1502 + $0x1c] sm:$0xf]
      %v1511 = vld [vmem:[%s1502 + $0x20] sm:$0xf]
      %v1512 = vld [vmem:[%s1502 + $0x24] sm:$0xf]
      %v1513 = vld [vmem:[%s1502 + $0x28] sm:$0xf]
      %v1514 = vld [vmem:[%s1502 + $0x2c] sm:$0xf]
      %v1515 = vld [vmem:[%s1502 + $0x30] sm:$0xf]
      %v1516 = vld [vmem:[%s1502 + $0x34] sm:$0xf]
      %v1517 = vld [vmem:[%s1502 + $0x38] sm:$0xf]
      %v1518 = vld [vmem:[%s1502 + $0x3c] sm:$0xf]
      %v1520 = vunpack.c.l.b16 %v1501
      %v1521 = vpack.c.b16 %v1187, %v1520
      %v1522 = vrot.slane %v1521, 2
      %v1523 = vrot.slane %v1192, 2
      %v1524 = vsel %vm656, %v1522, %v1523
      %v1525 = vrot.slane %v1406, 2
      %v1526 = vsel %vm656, %v1523, %v1525
      %v1545 = vunpack.c.l.b16 %v1503
      %v1546 = vunpack.c.l.b16 %v1504
      %v1547 = vunpack.c.l.b16 %v1505
      %v1548 = vunpack.c.l.b16 %v1506
      %v1549 = vunpack.c.l.b16 %v1507
      %v1550 = vunpack.c.l.b16 %v1508
      %v1551 = vunpack.c.l.b16 %v1509
      %v1552 = vunpack.c.l.b16 %v1510
      %v1553 = vunpack.c.l.b16 %v1511
      %v1554 = vunpack.c.l.b16 %v1512
      %v1555 = vunpack.c.l.b16 %v1513
      %v1556 = vunpack.c.l.b16 %v1514
      %v1557 = vunpack.c.l.b16 %v1515
      %v1558 = vunpack.c.l.b16 %v1516
      %v1559 = vunpack.c.l.b16 %v1517
      %v1560 = vunpack.c.l.b16 %v1518
      %v1561 = vpack.c.b16 %v1546, %v1545
      %v1562 = vpack.c.b16 %v1548, %v1547
      %v1563 = vpack.c.b16 %v1550, %v1549
      %v1564 = vpack.c.b16 %v1552, %v1551
      %v1565 = vpack.c.b16 %v1554, %v1553
      %v1566 = vpack.c.b16 %v1556, %v1555
      %v1567 = vpack.c.b16 %v1558, %v1557
      %v1568 = vpack.c.b16 %v1560, %v1559
      %1577 = vmatpush.bf16.msra.mxu0 %v1568
      %1578 = vmatpush.bf16.msra.mxu0 %v1567
      %1579 = vmatpush.bf16.msra.mxu0 %v1566
      %1580 = vmatpush.bf16.msra.mxu0 %v1565
      %1581 = vmatpush.bf16.msra.mxu0 %v1564
      %1582 = vmatpush.bf16.msra.mxu0 %v1563
      %1583 = vmatpush.bf16.msra.mxu0 %v1562
      %1584 = vmatpush.bf16.msra.mxu0 %v1561
      %1585 = vmatmul.bf16.gmra.mxu0 %v1524
      %v1586 = vpop.f32.mrf.mxu0
      %v1587 = vadd.f32 0.0, %v1586
      %v1588 = vpop.f32.mrf.mxu0
      %v1589 = vadd.f32 0.0, %v1588
      %1590 = vmatmul.bf16.gmra.mxu0 %v1526
      %v1591 = vpop.f32.mrf.mxu0
      %v1592 = vadd.f32 0.0, %v1591
      %v1593 = vpop.f32.mrf.mxu0
      %v1594 = vadd.f32 0.0, %v1593
      %1595 = vdwg.mxu0
      %v1596 = vadd.f32 %v1497, %v1587
      %v1597 = vadd.f32 %v1498, %v1589
      %v1598 = vadd.f32 %v1499, %v1592
      %v1599 = vadd.f32 %v1500, %v1594
      %v1600 = vld [vmem:[%s198 + $0x14] sm:$0x7]
      %s1601 = scalar_lea.vmem %s1, 832
      %v1602 = vld [vmem:[%s1601] sm:$0xf]
      %v1603 = vld [vmem:[%s1601 + $0x4] sm:$0xf]
      %v1604 = vld [vmem:[%s1601 + $0x8] sm:$0xf]
      %v1605 = vld [vmem:[%s1601 + $0xc] sm:$0xf]
      %v1606 = vld [vmem:[%s1601 + $0x10] sm:$0xf]
      %v1607 = vld [vmem:[%s1601 + $0x14] sm:$0xf]
      %v1608 = vld [vmem:[%s1601 + $0x18] sm:$0xf]
      %v1609 = vld [vmem:[%s1601 + $0x1c] sm:$0xf]
      %v1610 = vld [vmem:[%s1601 + $0x20] sm:$0xf]
      %v1611 = vld [vmem:[%s1601 + $0x24] sm:$0xf]
      %v1612 = vld [vmem:[%s1601 + $0x28] sm:$0xf]
      %v1613 = vld [vmem:[%s1601 + $0x2c] sm:$0xf]
      %v1614 = vld [vmem:[%s1601 + $0x30] sm:$0xf]
      %v1615 = vld [vmem:[%s1601 + $0x34] sm:$0xf]
      %v1616 = vld [vmem:[%s1601 + $0x38] sm:$0xf]
      %v1617 = vld [vmem:[%s1601 + $0x3c] sm:$0xf]
      %v1619 = vunpack.c.l.b16 %v1600
      %v1620 = vpack.c.b16 %v1619, %v1619
      %v1622 = vshrl.u32 %v1521, 16
      %v1624 = vrot.slane %v1622, 2
      %v1625 = vshll.u32 %v1521, 16
      %v1627 = vrot.slane %v1625, 3
      %v1628 = vor.u32 %v1624, %v1627
      %v1629 = vrot.slane %v1206, 2
      %v1630 = vrot.slane %v1202, 3
      %v1631 = vor.u32 %v1629, %v1630
      %v1632 = vsel %vm756, %v1628, %v1631
      %v1634 = vshrl.u32 %v1620, 16
      %v1636 = vrot.slane %v1634, 2
      %v1637 = vshll.u32 %v1620, 16
      %v1639 = vrot.slane %v1637, 3
      %v1640 = vor.u32 %v1636, %v1639
      %v1641 = vsel %vm756, %v1631, %v1640
      %v1660 = vunpack.c.l.b16 %v1602
      %v1661 = vunpack.c.l.b16 %v1603
      %v1662 = vunpack.c.l.b16 %v1604
      %v1663 = vunpack.c.l.b16 %v1605
      %v1664 = vunpack.c.l.b16 %v1606
      %v1665 = vunpack.c.l.b16 %v1607
      %v1666 = vunpack.c.l.b16 %v1608
      %v1667 = vunpack.c.l.b16 %v1609
      %v1668 = vunpack.c.l.b16 %v1610
      %v1669 = vunpack.c.l.b16 %v1611
      %v1670 = vunpack.c.l.b16 %v1612
      %v1671 = vunpack.c.l.b16 %v1613
      %v1672 = vunpack.c.l.b16 %v1614
      %v1673 = vunpack.c.l.b16 %v1615
      %v1674 = vunpack.c.l.b16 %v1616
      %v1675 = vunpack.c.l.b16 %v1617
      %v1676 = vpack.c.b16 %v1661, %v1660
      %v1677 = vpack.c.b16 %v1663, %v1662
      %v1678 = vpack.c.b16 %v1665, %v1664
      %v1679 = vpack.c.b16 %v1667, %v1666
      %v1680 = vpack.c.b16 %v1669, %v1668
      %v1681 = vpack.c.b16 %v1671, %v1670
      %v1682 = vpack.c.b16 %v1673, %v1672
      %v1683 = vpack.c.b16 %v1675, %v1674
      %1692 = vmatpush.bf16.msra.mxu0 %v1683
      %1693 = vmatpush.bf16.msra.mxu0 %v1682
      %1694 = vmatpush.bf16.msra.mxu0 %v1681
      %1695 = vmatpush.bf16.msra.mxu0 %v1680
      %1696 = vmatpush.bf16.msra.mxu0 %v1679
      %1697 = vmatpush.bf16.msra.mxu0 %v1678
      %1698 = vmatpush.bf16.msra.mxu0 %v1677
      %1699 = vmatpush.bf16.msra.mxu0 %v1676
      %1700 = vmatmul.bf16.gmra.mxu0 %v1632
      %v1701 = vpop.f32.mrf.mxu0
      %v1702 = vadd.f32 0.0, %v1701
      %v1703 = vpop.f32.mrf.mxu0
      %v1704 = vadd.f32 0.0, %v1703
      %1705 = vmatmul.bf16.gmra.mxu0 %v1641
      %v1706 = vpop.f32.mrf.mxu0
      %v1707 = vadd.f32 0.0, %v1706
      %v1708 = vpop.f32.mrf.mxu0
      %v1709 = vadd.f32 0.0, %v1708
      %1710 = vdwg.mxu0
      %v1711 = vadd.f32 %v1596, %v1702
      %v1712 = vadd.f32 %v1597, %v1704
      %v1713 = vadd.f32 %v1598, %v1707
      %v1714 = vadd.f32 %v1599, %v1709
      %v1715 = vld [vmem:[%s198 + $0x4] sm:$0x8]
      %s1716 = scalar_lea.vmem %s1, 896
      %v1717 = vld [vmem:[%s1716] sm:$0xf]
      %v1718 = vld [vmem:[%s1716 + $0x4] sm:$0xf]
      %v1719 = vld [vmem:[%s1716 + $0x8] sm:$0xf]
      %v1720 = vld [vmem:[%s1716 + $0xc] sm:$0xf]
      %v1721 = vld [vmem:[%s1716 + $0x10] sm:$0xf]
      %v1722 = vld [vmem:[%s1716 + $0x14] sm:$0xf]
      %v1723 = vld [vmem:[%s1716 + $0x18] sm:$0xf]
      %v1724 = vld [vmem:[%s1716 + $0x1c] sm:$0xf]
      %v1725 = vld [vmem:[%s1716 + $0x20] sm:$0xf]
      %v1726 = vld [vmem:[%s1716 + $0x24] sm:$0xf]
      %v1727 = vld [vmem:[%s1716 + $0x28] sm:$0xf]
      %v1728 = vld [vmem:[%s1716 + $0x2c] sm:$0xf]
      %v1729 = vld [vmem:[%s1716 + $0x30] sm:$0xf]
      %v1730 = vld [vmem:[%s1716 + $0x34] sm:$0xf]
      %v1731 = vld [vmem:[%s1716 + $0x38] sm:$0xf]
      %v1732 = vld [vmem:[%s1716 + $0x3c] sm:$0xf]
      %v1734 = vunpack.c.l.b16 %v1715
      %v1735 = vpack.c.b16 %v1187, %v1734
      %v1736 = vrot.slane %v1735, 3
      %v1737 = vrot.slane %v1192, 3
      %v1738 = vsel %vm872, %v1736, %v1737
      %v1739 = vrot.slane %v1620, 3
      %v1740 = vsel %vm872, %v1737, %v1739
      %v1759 = vunpack.c.l.b16 %v1717
      %v1760 = vunpack.c.l.b16 %v1718
      %v1761 = vunpack.c.l.b16 %v1719
      %v1762 = vunpack.c.l.b16 %v1720
      %v1763 = vunpack.c.l.b16 %v1721
      %v1764 = vunpack.c.l.b16 %v1722
      %v1765 = vunpack.c.l.b16 %v1723
      %v1766 = vunpack.c.l.b16 %v1724
      %v1767 = vunpack.c.l.b16 %v1725
      %v1768 = vunpack.c.l.b16 %v1726
      %v1769 = vunpack.c.l.b16 %v1727
      %v1770 = vunpack.c.l.b16 %v1728
      %v1771 = vunpack.c.l.b16 %v1729
      %v1772 = vunpack.c.l.b16 %v1730
      %v1773 = vunpack.c.l.b16 %v1731
      %v1774 = vunpack.c.l.b16 %v1732
      %v1775 = vpack.c.b16 %v1760, %v1759
      %v1776 = vpack.c.b16 %v1762, %v1761
      %v1777 = vpack.c.b16 %v1764, %v1763
      %v1778 = vpack.c.b16 %v1766, %v1765
      %v1779 = vpack.c.b16 %v1768, %v1767
      %v1780 = vpack.c.b16 %v1770, %v1769
      %v1781 = vpack.c.b16 %v1772, %v1771
      %v1782 = vpack.c.b16 %v1774, %v1773
      %1791 = vmatpush.bf16.msra.mxu0 %v1782
      %1792 = vmatpush.bf16.msra.mxu0 %v1781
      %1793 = vmatpush.bf16.msra.mxu0 %v1780
      %1794 = vmatpush.bf16.msra.mxu0 %v1779
      %1795 = vmatpush.bf16.msra.mxu0 %v1778
      %1796 = vmatpush.bf16.msra.mxu0 %v1777
      %1797 = vmatpush.bf16.msra.mxu0 %v1776
      %1798 = vmatpush.bf16.msra.mxu0 %v1775
      %1799 = vmatmul.bf16.gmra.mxu0 %v1738
      %v1800 = vpop.f32.mrf.mxu0
      %v1801 = vadd.f32 0.0, %v1800
      %v1802 = vpop.f32.mrf.mxu0
      %v1803 = vadd.f32 0.0, %v1802
      %1804 = vmatmul.bf16.gmra.mxu0 %v1740
      %v1805 = vpop.f32.mrf.mxu0
      %v1806 = vadd.f32 0.0, %v1805
      %v1807 = vpop.f32.mrf.mxu0
      %v1808 = vadd.f32 0.0, %v1807
      %1809 = vdwg.mxu0
      %v1810 = vadd.f32 %v1711, %v1801
      %v1811 = vadd.f32 %v1712, %v1803
      %v1812 = vadd.f32 %v1713, %v1806
      %v1813 = vadd.f32 %v1714, %v1808
      %v1814 = vld [vmem:[%s198 + $0x14] sm:$0xf]
      %s1815 = scalar_lea.vmem %s1, 960
      %v1816 = vld [vmem:[%s1815] sm:$0xf]
      %v1817 = vld [vmem:[%s1815 + $0x4] sm:$0xf]
      %v1818 = vld [vmem:[%s1815 + $0x8] sm:$0xf]
      %v1819 = vld [vmem:[%s1815 + $0xc] sm:$0xf]
      %v1820 = vld [vmem:[%s1815 + $0x10] sm:$0xf]
      %v1821 = vld [vmem:[%s1815 + $0x14] sm:$0xf]
      %v1822 = vld [vmem:[%s1815 + $0x18] sm:$0xf]
      %v1823 = vld [vmem:[%s1815 + $0x1c] sm:$0xf]
      %v1824 = vld [vmem:[%s1815 + $0x20] sm:$0xf]
      %v1825 = vld [vmem:[%s1815 + $0x24] sm:$0xf]
      %v1826 = vld [vmem:[%s1815 + $0x28] sm:$0xf]
      %v1827 = vld [vmem:[%s1815 + $0x2c] sm:$0xf]
      %v1828 = vld [vmem:[%s1815 + $0x30] sm:$0xf]
      %v1829 = vld [vmem:[%s1815 + $0x34] sm:$0xf]
      %v1830 = vld [vmem:[%s1815 + $0x38] sm:$0xf]
      %v1831 = vld [vmem:[%s1815 + $0x3c] sm:$0xf]
      %v1833 = vunpack.c.l.b16 %v1814
      %v1834 = vpack.c.b16 %v1833, %v1833
      %v1836 = vshrl.u32 %v1735, 16
      %v1838 = vrot.slane %v1836, 3
      %v1839 = vshll.u32 %v1735, 16
      %v1841 = vrot.slane %v1839, 4
      %v1842 = vor.u32 %v1838, %v1841
      %v1843 = vrot.slane %v1206, 3
      %v1844 = vrot.slane %v1202, 4
      %v1845 = vor.u32 %v1843, %v1844
      %v1846 = vsel %vm972, %v1842, %v1845
      %v1848 = vshrl.u32 %v1834, 16
      %v1850 = vrot.slane %v1848, 3
      %v1851 = vshll.u32 %v1834, 16
      %v1853 = vrot.slane %v1851, 4
      %v1854 = vor.u32 %v1850, %v1853
      %v1855 = vsel %vm972, %v1845, %v1854
      %v1874 = vunpack.c.l.b16 %v1816
      %v1875 = vunpack.c.l.b16 %v1817
      %v1876 = vunpack.c.l.b16 %v1818
      %v1877 = vunpack.c.l.b16 %v1819
      %v1878 = vunpack.c.l.b16 %v1820
      %v1879 = vunpack.c.l.b16 %v1821
      %v1880 = vunpack.c.l.b16 %v1822
      %v1881 = vunpack.c.l.b16 %v1823
      %v1882 = vunpack.c.l.b16 %v1824
      %v1883 = vunpack.c.l.b16 %v1825
      %v1884 = vunpack.c.l.b16 %v1826
      %v1885 = vunpack.c.l.b16 %v1827
      %v1886 = vunpack.c.l.b16 %v1828
      %v1887 = vunpack.c.l.b16 %v1829
      %v1888 = vunpack.c.l.b16 %v1830
      %v1889 = vunpack.c.l.b16 %v1831
      %v1890 = vpack.c.b16 %v1875, %v1874
      %v1891 = vpack.c.b16 %v1877, %v1876
      %v1892 = vpack.c.b16 %v1879, %v1878
      %v1893 = vpack.c.b16 %v1881, %v1880
      %v1894 = vpack.c.b16 %v1883, %v1882
      %v1895 = vpack.c.b16 %v1885, %v1884
      %v1896 = vpack.c.b16 %v1887, %v1886
      %v1897 = vpack.c.b16 %v1889, %v1888
      %1906 = vmatpush.bf16.msra.mxu0 %v1897
      %1907 = vmatpush.bf16.msra.mxu0 %v1896
      %1908 = vmatpush.bf16.msra.mxu0 %v1895
      %1909 = vmatpush.bf16.msra.mxu0 %v1894
      %1910 = vmatpush.bf16.msra.mxu0 %v1893
      %1911 = vmatpush.bf16.msra.mxu0 %v1892
      %1912 = vmatpush.bf16.msra.mxu0 %v1891
      %1913 = vmatpush.bf16.msra.mxu0 %v1890
      %1914 = vmatmul.bf16.gmra.mxu0 %v1846
      %v1915 = vpop.f32.mrf.mxu0
      %v1916 = vadd.f32 0.0, %v1915
      %v1917 = vpop.f32.mrf.mxu0
      %v1918 = vadd.f32 0.0, %v1917
      %1919 = vmatmul.bf16.gmra.mxu0 %v1855
      %v1920 = vpop.f32.mrf.mxu0
      %v1921 = vadd.f32 0.0, %v1920
      %v1922 = vpop.f32.mrf.mxu0
      %v1923 = vadd.f32 0.0, %v1922
      %1924 = vdwg.mxu0
      %v1925 = vadd.f32 %v1810, %v1916
      %v1926 = vadd.f32 %v1811, %v1918
      %v1927 = vadd.f32 %v1812, %v1921
      %v1928 = vadd.f32 %v1813, %v1923
      %s1929 = scalar_lea.vmem %s1, 1024
      %v1930 = vld [vmem:[%s1929] sm:$0xf]
      %v1931 = vld [vmem:[%s1929 + $0x4] sm:$0xf]
      %v1932 = vld [vmem:[%s1929 + $0x8] sm:$0xf]
      %v1933 = vld [vmem:[%s1929 + $0xc] sm:$0xf]
      %v1934 = vld [vmem:[%s1929 + $0x10] sm:$0xf]
      %v1935 = vld [vmem:[%s1929 + $0x14] sm:$0xf]
      %v1936 = vld [vmem:[%s1929 + $0x18] sm:$0xf]
      %v1937 = vld [vmem:[%s1929 + $0x1c] sm:$0xf]
      %v1938 = vld [vmem:[%s1929 + $0x20] sm:$0xf]
      %v1939 = vld [vmem:[%s1929 + $0x24] sm:$0xf]
      %v1940 = vld [vmem:[%s1929 + $0x28] sm:$0xf]
      %v1941 = vld [vmem:[%s1929 + $0x2c] sm:$0xf]
      %v1942 = vld [vmem:[%s1929 + $0x30] sm:$0xf]
      %v1943 = vld [vmem:[%s1929 + $0x34] sm:$0xf]
      %v1944 = vld [vmem:[%s1929 + $0x38] sm:$0xf]
      %v1945 = vld [vmem:[%s1929 + $0x3c] sm:$0xf]
      %v1946 = vpack.c.b16 %v1188, %v1187
      %v1947 = vpack.c.b16 %v1833, %v1189
      %v1966 = vunpack.c.l.b16 %v1930
      %v1967 = vunpack.c.l.b16 %v1931
      %v1968 = vunpack.c.l.b16 %v1932
      %v1969 = vunpack.c.l.b16 %v1933
      %v1970 = vunpack.c.l.b16 %v1934
      %v1971 = vunpack.c.l.b16 %v1935
      %v1972 = vunpack.c.l.b16 %v1936
      %v1973 = vunpack.c.l.b16 %v1937
      %v1974 = vunpack.c.l.b16 %v1938
      %v1975 = vunpack.c.l.b16 %v1939
      %v1976 = vunpack.c.l.b16 %v1940
      %v1977 = vunpack.c.l.b16 %v1941
      %v1978 = vunpack.c.l.b16 %v1942
      %v1979 = vunpack.c.l.b16 %v1943
      %v1980 = vunpack.c.l.b16 %v1944
      %v1981 = vunpack.c.l.b16 %v1945
      %v1982 = vpack.c.b16 %v1967, %v1966
      %v1983 = vpack.c.b16 %v1969, %v1968
      %v1984 = vpack.c.b16 %v1971, %v1970
      %v1985 = vpack.c.b16 %v1973, %v1972
      %v1986 = vpack.c.b16 %v1975, %v1974
      %v1987 = vpack.c.b16 %v1977, %v1976
      %v1988 = vpack.c.b16 %v1979, %v1978
      %v1989 = vpack.c.b16 %v1981, %v1980
      %1998 = vmatpush.bf16.msra.mxu0 %v1989
      %1999 = vmatpush.bf16.msra.mxu0 %v1988
      %2000 = vmatpush.bf16.msra.mxu0 %v1987
      %2001 = vmatpush.bf16.msra.mxu0 %v1986
      %2002 = vmatpush.bf16.msra.mxu0 %v1985
      %2003 = vmatpush.bf16.msra.mxu0 %v1984
      %2004 = vmatpush.bf16.msra.mxu0 %v1983
      %2005 = vmatpush.bf16.msra.mxu0 %v1982
      %2006 = vmatmul.bf16.gmra.mxu0 %v1946
      %v2007 = vpop.f32.mrf.mxu0
      %v2008 = vadd.f32 0.0, %v2007
      %v2009 = vpop.f32.mrf.mxu0
      %v2010 = vadd.f32 0.0, %v2009
      %2011 = vmatmul.bf16.gmra.mxu0 %v1947
      %v2012 = vpop.f32.mrf.mxu0
      %v2013 = vadd.f32 0.0, %v2012
      %v2014 = vpop.f32.mrf.mxu0
      %v2015 = vadd.f32 0.0, %v2014
      %2016 = vdwg.mxu0
      %v2017 = vadd.f32 %v1925, %v2008
      %v2018 = vadd.f32 %v1926, %v2010
      %v2019 = vadd.f32 %v1927, %v2013
      %v2020 = vadd.f32 %v1928, %v2015
      %v2021 = vld [vmem:[%s198 + $0x8] sm:$0xf]
      %v2022 = vld [vmem:[%s198 + $0xc] sm:$0xf]
      %v2023 = vld [vmem:[%s198 + $0x10] sm:$0xf]
      %v2024 = vld [vmem:[%s198 + $0x14] sm:$0xf]
      %v2025 = vld [vmem:[%s198 + $0x18] sm:$0x1]
      %s2026 = scalar_lea.vmem %s1, 1088
      %v2027 = vld [vmem:[%s2026] sm:$0xf]
      %v2028 = vld [vmem:[%s2026 + $0x4] sm:$0xf]
      %v2029 = vld [vmem:[%s2026 + $0x8] sm:$0xf]
      %v2030 = vld [vmem:[%s2026 + $0xc] sm:$0xf]
      %v2031 = vld [vmem:[%s2026 + $0x10] sm:$0xf]
      %v2032 = vld [vmem:[%s2026 + $0x14] sm:$0xf]
      %v2033 = vld [vmem:[%s2026 + $0x18] sm:$0xf]
      %v2034 = vld [vmem:[%s2026 + $0x1c] sm:$0xf]
      %v2035 = vld [vmem:[%s2026 + $0x20] sm:$0xf]
      %v2036 = vld [vmem:[%s2026 + $0x24] sm:$0xf]
      %v2037 = vld [vmem:[%s2026 + $0x28] sm:$0xf]
      %v2038 = vld [vmem:[%s2026 + $0x2c] sm:$0xf]
      %v2039 = vld [vmem:[%s2026 + $0x30] sm:$0xf]
      %v2040 = vld [vmem:[%s2026 + $0x34] sm:$0xf]
      %v2041 = vld [vmem:[%s2026 + $0x38] sm:$0xf]
      %v2042 = vld [vmem:[%s2026 + $0x3c] sm:$0xf]
      %v2048 = vunpack.c.l.b16 %v2021
      %v2049 = vunpack.c.l.b16 %v2022
      %v2050 = vunpack.c.l.b16 %v2023
      %v2051 = vunpack.c.l.b16 %v2024
      %v2052 = vunpack.c.l.b16 %v2025
      %v2053 = vpack.c.b16 %v2049, %v2048
      %v2054 = vpack.c.b16 %v2051, %v2050
      %v2055 = vpack.c.b16 %v2052, %v2052
      %v2057 = vshrl.u32 %v2053, 16
      %v2059 = vshll.u32 %v2053, 16
      %v2061 = vrot.slane %v2059, 1
      %v2062 = vor.u32 %v2057, %v2061
      %v2064 = vshll.u32 %v2054, 16
      %v2066 = vrot.slane %v2064, 1
      %v2067 = vsel %vm260, %v2062, %v2066
      %v2068 = vshrl.u32 %v2054, 16
      %v2070 = vor.u32 %v2068, %v2066
      %v2072 = vshll.u32 %v2055, 16
      %v2074 = vrot.slane %v2072, 1
      %v2075 = vsel %vm260, %v2070, %v2074
      %v2094 = vunpack.c.l.b16 %v2027
      %v2095 = vunpack.c.l.b16 %v2028
      %v2096 = vunpack.c.l.b16 %v2029
      %v2097 = vunpack.c.l.b16 %v2030
      %v2098 = vunpack.c.l.b16 %v2031
      %v2099 = vunpack.c.l.b16 %v2032
      %v2100 = vunpack.c.l.b16 %v2033
      %v2101 = vunpack.c.l.b16 %v2034
      %v2102 = vunpack.c.l.b16 %v2035
      %v2103 = vunpack.c.l.b16 %v2036
      %v2104 = vunpack.c.l.b16 %v2037
      %v2105 = vunpack.c.l.b16 %v2038
      %v2106 = vunpack.c.l.b16 %v2039
      %v2107 = vunpack.c.l.b16 %v2040
      %v2108 = vunpack.c.l.b16 %v2041
      %v2109 = vunpack.c.l.b16 %v2042
      %v2110 = vpack.c.b16 %v2095, %v2094
      %v2111 = vpack.c.b16 %v2097, %v2096
      %v2112 = vpack.c.b16 %v2099, %v2098
      %v2113 = vpack.c.b16 %v2101, %v2100
      %v2114 = vpack.c.b16 %v2103, %v2102
      %v2115 = vpack.c.b16 %v2105, %v2104
      %v2116 = vpack.c.b16 %v2107, %v2106
      %v2117 = vpack.c.b16 %v2109, %v2108
      %2126 = vmatpush.bf16.msra.mxu0 %v2117
      %2127 = vmatpush.bf16.msra.mxu0 %v2116
      %2128 = vmatpush.bf16.msra.mxu0 %v2115
      %2129 = vmatpush.bf16.msra.mxu0 %v2114
      %2130 = vmatpush.bf16.msra.mxu0 %v2113
      %2131 = vmatpush.bf16.msra.mxu0 %v2112
      %2132 = vmatpush.bf16.msra.mxu0 %v2111
      %2133 = vmatpush.bf16.msra.mxu0 %v2110
      %2134 = vmatmul.bf16.gmra.mxu0 %v2067
      %v2135 = vpop.f32.mrf.mxu0
      %v2136 = vadd.f32 0.0, %v2135
      %v2137 = vpop.f32.mrf.mxu0
      %v2138 = vadd.f32 0.0, %v2137
      %2139 = vmatmul.bf16.gmra.mxu0 %v2075
      %v2140 = vpop.f32.mrf.mxu0
      %v2141 = vadd.f32 0.0, %v2140
      %v2142 = vpop.f32.mrf.mxu0
      %v2143 = vadd.f32 0.0, %v2142
      %2144 = vdwg.mxu0
      %v2145 = vadd.f32 %v2017, %v2136
      %v2146 = vadd.f32 %v2018, %v2138
      %v2147 = vadd.f32 %v2019, %v2141
      %v2148 = vadd.f32 %v2020, %v2143
      %v2149 = vld [vmem:[%s198 + $0x8] sm:$0xe]
      %s2150 = scalar_lea.vmem %s1, 1152
      %v2151 = vld [vmem:[%s2150] sm:$0xf]
      %v2152 = vld [vmem:[%s2150 + $0x4] sm:$0xf]
      %v2153 = vld [vmem:[%s2150 + $0x8] sm:$0xf]
      %v2154 = vld [vmem:[%s2150 + $0xc] sm:$0xf]
      %v2155 = vld [vmem:[%s2150 + $0x10] sm:$0xf]
      %v2156 = vld [vmem:[%s2150 + $0x14] sm:$0xf]
      %v2157 = vld [vmem:[%s2150 + $0x18] sm:$0xf]
      %v2158 = vld [vmem:[%s2150 + $0x1c] sm:$0xf]
      %v2159 = vld [vmem:[%s2150 + $0x20] sm:$0xf]
      %v2160 = vld [vmem:[%s2150 + $0x24] sm:$0xf]
      %v2161 = vld [vmem:[%s2150 + $0x28] sm:$0xf]
      %v2162 = vld [vmem:[%s2150 + $0x2c] sm:$0xf]
      %v2163 = vld [vmem:[%s2150 + $0x30] sm:$0xf]
      %v2164 = vld [vmem:[%s2150 + $0x34] sm:$0xf]
      %v2165 = vld [vmem:[%s2150 + $0x38] sm:$0xf]
      %v2166 = vld [vmem:[%s2150 + $0x3c] sm:$0xf]
      %v2168 = vunpack.c.l.b16 %v2149
      %v2169 = vpack.c.b16 %v2049, %v2168
      %v2170 = vrot.slane %v2169, 1
      %v2171 = vrot.slane %v2054, 1
      %v2172 = vsel %vm440, %v2170, %v2171
      %v2173 = vrot.slane %v2055, 1
      %v2174 = vsel %vm440, %v2171, %v2173
      %v2193 = vunpack.c.l.b16 %v2151
      %v2194 = vunpack.c.l.b16 %v2152
      %v2195 = vunpack.c.l.b16 %v2153
      %v2196 = vunpack.c.l.b16 %v2154
      %v2197 = vunpack.c.l.b16 %v2155
      %v2198 = vunpack.c.l.b16 %v2156
      %v2199 = vunpack.c.l.b16 %v2157
      %v2200 = vunpack.c.l.b16 %v2158
      %v2201 = vunpack.c.l.b16 %v2159
      %v2202 = vunpack.c.l.b16 %v2160
      %v2203 = vunpack.c.l.b16 %v2161
      %v2204 = vunpack.c.l.b16 %v2162
      %v2205 = vunpack.c.l.b16 %v2163
      %v2206 = vunpack.c.l.b16 %v2164
      %v2207 = vunpack.c.l.b16 %v2165
      %v2208 = vunpack.c.l.b16 %v2166
      %v2209 = vpack.c.b16 %v2194, %v2193
      %v2210 = vpack.c.b16 %v2196, %v2195
      %v2211 = vpack.c.b16 %v2198, %v2197
      %v2212 = vpack.c.b16 %v2200, %v2199
      %v2213 = vpack.c.b16 %v2202, %v2201
      %v2214 = vpack.c.b16 %v2204, %v2203
      %v2215 = vpack.c.b16 %v2206, %v2205
      %v2216 = vpack.c.b16 %v2208, %v2207
      %2225 = vmatpush.bf16.msra.mxu0 %v2216
      %2226 = vmatpush.bf16.msra.mxu0 %v2215
      %2227 = vmatpush.bf16.msra.mxu0 %v2214
      %2228 = vmatpush.bf16.msra.mxu0 %v2213
      %2229 = vmatpush.bf16.msra.mxu0 %v2212
      %2230 = vmatpush.bf16.msra.mxu0 %v2211
      %2231 = vmatpush.bf16.msra.mxu0 %v2210
      %2232 = vmatpush.bf16.msra.mxu0 %v2209
      %2233 = vmatmul.bf16.gmra.mxu0 %v2172
      %v2234 = vpop.f32.mrf.mxu0
      %v2235 = vadd.f32 0.0, %v2234
      %v2236 = vpop.f32.mrf.mxu0
      %v2237 = vadd.f32 0.0, %v2236
      %2238 = vmatmul.bf16.gmra.mxu0 %v2174
      %v2239 = vpop.f32.mrf.mxu0
      %v2240 = vadd.f32 0.0, %v2239
      %v2241 = vpop.f32.mrf.mxu0
      %v2242 = vadd.f32 0.0, %v2241
      %2243 = vdwg.mxu0
      %v2244 = vadd.f32 %v2145, %v2235
      %v2245 = vadd.f32 %v2146, %v2237
      %v2246 = vadd.f32 %v2147, %v2240
      %v2247 = vadd.f32 %v2148, %v2242
      %v2248 = vld [vmem:[%s198 + $0x18] sm:$0x3]
      %s2249 = scalar_lea.vmem %s1, 1216
      %v2250 = vld [vmem:[%s2249] sm:$0xf]
      %v2251 = vld [vmem:[%s2249 + $0x4] sm:$0xf]
      %v2252 = vld [vmem:[%s2249 + $0x8] sm:$0xf]
      %v2253 = vld [vmem:[%s2249 + $0xc] sm:$0xf]
      %v2254 = vld [vmem:[%s2249 + $0x10] sm:$0xf]
      %v2255 = vld [vmem:[%s2249 + $0x14] sm:$0xf]
      %v2256 = vld [vmem:[%s2249 + $0x18] sm:$0xf]
      %v2257 = vld [vmem:[%s2249 + $0x1c] sm:$0xf]
      %v2258 = vld [vmem:[%s2249 + $0x20] sm:$0xf]
      %v2259 = vld [vmem:[%s2249 + $0x24] sm:$0xf]
      %v2260 = vld [vmem:[%s2249 + $0x28] sm:$0xf]
      %v2261 = vld [vmem:[%s2249 + $0x2c] sm:$0xf]
      %v2262 = vld [vmem:[%s2249 + $0x30] sm:$0xf]
      %v2263 = vld [vmem:[%s2249 + $0x34] sm:$0xf]
      %v2264 = vld [vmem:[%s2249 + $0x38] sm:$0xf]
      %v2265 = vld [vmem:[%s2249 + $0x3c] sm:$0xf]
      %v2267 = vunpack.c.l.b16 %v2248
      %v2268 = vpack.c.b16 %v2267, %v2267
      %v2270 = vshrl.u32 %v2169, 16
      %v2272 = vrot.slane %v2270, 1
      %v2273 = vshll.u32 %v2169, 16
      %v2275 = vrot.slane %v2273, 2
      %v2276 = vor.u32 %v2272, %v2275
      %v2277 = vrot.slane %v2068, 1
      %v2278 = vrot.slane %v2064, 2
      %v2279 = vor.u32 %v2277, %v2278
      %v2280 = vsel %vm540, %v2276, %v2279
      %v2282 = vshrl.u32 %v2268, 16
      %v2284 = vrot.slane %v2282, 1
      %v2285 = vshll.u32 %v2268, 16
      %v2287 = vrot.slane %v2285, 2
      %v2288 = vor.u32 %v2284, %v2287
      %v2289 = vsel %vm540, %v2279, %v2288
      %v2308 = vunpack.c.l.b16 %v2250
      %v2309 = vunpack.c.l.b16 %v2251
      %v2310 = vunpack.c.l.b16 %v2252
      %v2311 = vunpack.c.l.b16 %v2253
      %v2312 = vunpack.c.l.b16 %v2254
      %v2313 = vunpack.c.l.b16 %v2255
      %v2314 = vunpack.c.l.b16 %v2256
      %v2315 = vunpack.c.l.b16 %v2257
      %v2316 = vunpack.c.l.b16 %v2258
      %v2317 = vunpack.c.l.b16 %v2259
      %v2318 = vunpack.c.l.b16 %v2260
      %v2319 = vunpack.c.l.b16 %v2261
      %v2320 = vunpack.c.l.b16 %v2262
      %v2321 = vunpack.c.l.b16 %v2263
      %v2322 = vunpack.c.l.b16 %v2264
      %v2323 = vunpack.c.l.b16 %v2265
      %v2324 = vpack.c.b16 %v2309, %v2308
      %v2325 = vpack.c.b16 %v2311, %v2310
      %v2326 = vpack.c.b16 %v2313, %v2312
      %v2327 = vpack.c.b16 %v2315, %v2314
      %v2328 = vpack.c.b16 %v2317, %v2316
      %v2329 = vpack.c.b16 %v2319, %v2318
      %v2330 = vpack.c.b16 %v2321, %v2320
      %v2331 = vpack.c.b16 %v2323, %v2322
      %2340 = vmatpush.bf16.msra.mxu0 %v2331
      %2341 = vmatpush.bf16.msra.mxu0 %v2330
      %2342 = vmatpush.bf16.msra.mxu0 %v2329
      %2343 = vmatpush.bf16.msra.mxu0 %v2328
      %2344 = vmatpush.bf16.msra.mxu0 %v2327
      %2345 = vmatpush.bf16.msra.mxu0 %v2326
      %2346 = vmatpush.bf16.msra.mxu0 %v2325
      %2347 = vmatpush.bf16.msra.mxu0 %v2324
      %2348 = vmatmul.bf16.gmra.mxu0 %v2280
      %v2349 = vpop.f32.mrf.mxu0
      %v2350 = vadd.f32 0.0, %v2349
      %v2351 = vpop.f32.mrf.mxu0
      %v2352 = vadd.f32 0.0, %v2351
      %2353 = vmatmul.bf16.gmra.mxu0 %v2289
      %v2354 = vpop.f32.mrf.mxu0
      %v2355 = vadd.f32 0.0, %v2354
      %v2356 = vpop.f32.mrf.mxu0
      %v2357 = vadd.f32 0.0, %v2356
      %2358 = vdwg.mxu0
      %v2359 = vadd.f32 %v2244, %v2350
      %v2360 = vadd.f32 %v2245, %v2352
      %v2361 = vadd.f32 %v2246, %v2355
      %v2362 = vadd.f32 %v2247, %v2357
      %v2363 = vld [vmem:[%s198 + $0x8] sm:$0xc]
      %s2364 = scalar_lea.vmem %s1, 1280
      %v2365 = vld [vmem:[%s2364] sm:$0xf]
      %v2366 = vld [vmem:[%s2364 + $0x4] sm:$0xf]
      %v2367 = vld [vmem:[%s2364 + $0x8] sm:$0xf]
      %v2368 = vld [vmem:[%s2364 + $0xc] sm:$0xf]
      %v2369 = vld [vmem:[%s2364 + $0x10] sm:$0xf]
      %v2370 = vld [vmem:[%s2364 + $0x14] sm:$0xf]
      %v2371 = vld [vmem:[%s2364 + $0x18] sm:$0xf]
      %v2372 = vld [vmem:[%s2364 + $0x1c] sm:$0xf]
      %v2373 = vld [vmem:[%s2364 + $0x20] sm:$0xf]
      %v2374 = vld [vmem:[%s2364 + $0x24] sm:$0xf]
      %v2375 = vld [vmem:[%s2364 + $0x28] sm:$0xf]
      %v2376 = vld [vmem:[%s2364 + $0x2c] sm:$0xf]
      %v2377 = vld [vmem:[%s2364 + $0x30] sm:$0xf]
      %v2378 = vld [vmem:[%s2364 + $0x34] sm:$0xf]
      %v2379 = vld [vmem:[%s2364 + $0x38] sm:$0xf]
      %v2380 = vld [vmem:[%s2364 + $0x3c] sm:$0xf]
      %v2382 = vunpack.c.l.b16 %v2363
      %v2383 = vpack.c.b16 %v2049, %v2382
      %v2384 = vrot.slane %v2383, 2
      %v2385 = vrot.slane %v2054, 2
      %v2386 = vsel %vm656, %v2384, %v2385
      %v2387 = vrot.slane %v2268, 2
      %v2388 = vsel %vm656, %v2385, %v2387
      %v2407 = vunpack.c.l.b16 %v2365
      %v2408 = vunpack.c.l.b16 %v2366
      %v2409 = vunpack.c.l.b16 %v2367
      %v2410 = vunpack.c.l.b16 %v2368
      %v2411 = vunpack.c.l.b16 %v2369
      %v2412 = vunpack.c.l.b16 %v2370
      %v2413 = vunpack.c.l.b16 %v2371
      %v2414 = vunpack.c.l.b16 %v2372
      %v2415 = vunpack.c.l.b16 %v2373
      %v2416 = vunpack.c.l.b16 %v2374
      %v2417 = vunpack.c.l.b16 %v2375
      %v2418 = vunpack.c.l.b16 %v2376
      %v2419 = vunpack.c.l.b16 %v2377
      %v2420 = vunpack.c.l.b16 %v2378
      %v2421 = vunpack.c.l.b16 %v2379
      %v2422 = vunpack.c.l.b16 %v2380
      %v2423 = vpack.c.b16 %v2408, %v2407
      %v2424 = vpack.c.b16 %v2410, %v2409
      %v2425 = vpack.c.b16 %v2412, %v2411
      %v2426 = vpack.c.b16 %v2414, %v2413
      %v2427 = vpack.c.b16 %v2416, %v2415
      %v2428 = vpack.c.b16 %v2418, %v2417
      %v2429 = vpack.c.b16 %v2420, %v2419
      %v2430 = vpack.c.b16 %v2422, %v2421
      %2439 = vmatpush.bf16.msra.mxu0 %v2430
      %2440 = vmatpush.bf16.msra.mxu0 %v2429
      %2441 = vmatpush.bf16.msra.mxu0 %v2428
      %2442 = vmatpush.bf16.msra.mxu0 %v2427
      %2443 = vmatpush.bf16.msra.mxu0 %v2426
      %2444 = vmatpush.bf16.msra.mxu0 %v2425
      %2445 = vmatpush.bf16.msra.mxu0 %v2424
      %2446 = vmatpush.bf16.msra.mxu0 %v2423
      %2447 = vmatmul.bf16.gmra.mxu0 %v2386
      %v2448 = vpop.f32.mrf.mxu0
      %v2449 = vadd.f32 0.0, %v2448
      %v2450 = vpop.f32.mrf.mxu0
      %v2451 = vadd.f32 0.0, %v2450
      %2452 = vmatmul.bf16.gmra.mxu0 %v2388
      %v2453 = vpop.f32.mrf.mxu0
      %v2454 = vadd.f32 0.0, %v2453
      %v2455 = vpop.f32.mrf.mxu0
      %v2456 = vadd.f32 0.0, %v2455
      %2457 = vdwg.mxu0
      %v2458 = vadd.f32 %v2359, %v2449
      %v2459 = vadd.f32 %v2360, %v2451
      %v2460 = vadd.f32 %v2361, %v2454
      %v2461 = vadd.f32 %v2362, %v2456
      %s2462 = sld [smem:[#allocation2]]
      %v2463 = vstv %s2462
      %v2464 = vadd.f32 %v2458, %v2463
      %v2465 = vadd.f32 %v2459, %v2463
      %v2466 = vadd.f32 %v2460, %v2463
      %v2467 = vadd.f32 %v2461, %v2463
      %v2468 = vxor.u32 %v2464, 2147483648
      %v2469 = vxor.u32 %v2465, 2147483648
      %v2470 = vxor.u32 %v2466, 2147483648
      %v2471 = vxor.u32 %v2467, 2147483648
      %v2472 = vmul.f32 %v2468, 1.442695
      %v2473 = vpow.pop %v2472
      %v2474 = vmul.f32 %v2469, 1.442695
      %v2475 = vpow.pop %v2474
      %v2476 = vmul.f32 %v2470, 1.442695
      %v2477 = vpow.pop %v2476
      %v2478 = vmul.f32 %v2471, 1.442695
      %v2479 = vpow.pop %v2478
      %v2480 = vadd.f32 %v2473, 1.0
      %v2481 = vadd.f32 %v2475, 1.0
      %v2482 = vadd.f32 %v2477, 1.0
      %v2483 = vadd.f32 %v2479, 1.0
      %v2484 = vrcp.pop %v2480
      %v2485 = vmul.f32 %v2480, %v2484
      %v2486 = vsub.f32 1.0, %v2485
      %v2487 = vmul.f32 %v2484, %v2486
      %v2488 = vadd.f32 %v2484, %v2487
      %vm2489 = vweird.f32 %v2480
      %vm2490 = vweird.f32 %v2484
      %vm2491 = vmor %vm2489, %vm2490
      %v2492 = vsel %vm2491, %v2484, %v2488
      %v2493 = vand.u32 2147483647, %v2480
      %vm2494 = vcmp.eq.f32.partialorder %v2493, 8.507059e+37
      %v2495 = vand.u32 %v2480, 2147483648
      %v2496 = vor.u32 1.1754944e-38, %v2495
      %v2497 = vsel %vm2494, %v2496, %v2492
      %v2498 = vmul.f32 1.0, %v2497
      %v2499 = vrcp.pop %v2481
      %v2500 = vmul.f32 %v2481, %v2499
      %v2501 = vsub.f32 1.0, %v2500
      %v2502 = vmul.f32 %v2499, %v2501
      %v2503 = vadd.f32 %v2499, %v2502
      %vm2504 = vweird.f32 %v2481
      %vm2505 = vweird.f32 %v2499
      %vm2506 = vmor %vm2504, %vm2505
      %v2507 = vsel %vm2506, %v2499, %v2503
      %v2508 = vand.u32 2147483647, %v2481
      %vm2509 = vcmp.eq.f32.partialorder %v2508, 8.507059e+37
      %v2510 = vand.u32 %v2481, 2147483648
      %v2511 = vor.u32 1.1754944e-38, %v2510
      %v2512 = vsel %vm2509, %v2511, %v2507
      %v2513 = vmul.f32 1.0, %v2512
      %v2514 = vrcp.pop %v2482
      %v2515 = vmul.f32 %v2482, %v2514
      %v2516 = vsub.f32 1.0, %v2515
      %v2517 = vmul.f32 %v2514, %v2516
      %v2518 = vadd.f32 %v2514, %v2517
      %vm2519 = vweird.f32 %v2482
      %vm2520 = vweird.f32 %v2514
      %vm2521 = vmor %vm2519, %vm2520
      %v2522 = vsel %vm2521, %v2514, %v2518
      %v2523 = vand.u32 2147483647, %v2482
      %vm2524 = vcmp.eq.f32.partialorder %v2523, 8.507059e+37
      %v2525 = vand.u32 %v2482, 2147483648
      %v2526 = vor.u32 1.1754944e-38, %v2525
      %v2527 = vsel %vm2524, %v2526, %v2522
      %v2528 = vmul.f32 1.0, %v2527
      %v2529 = vrcp.pop %v2483
      %v2530 = vmul.f32 %v2483, %v2529
      %v2531 = vsub.f32 1.0, %v2530
      %v2532 = vmul.f32 %v2529, %v2531
      %v2533 = vadd.f32 %v2529, %v2532
      %vm2534 = vweird.f32 %v2483
      %vm2535 = vweird.f32 %v2529
      %vm2536 = vmor %vm2534, %vm2535
      %v2537 = vsel %vm2536, %v2529, %v2533
      %v2538 = vand.u32 2147483647, %v2483
      %vm2539 = vcmp.eq.f32.partialorder %v2538, 8.507059e+37
      %v2540 = vand.u32 %v2483, 2147483648
      %v2541 = vor.u32 1.1754944e-38, %v2540
      %v2542 = vsel %vm2539, %v2541, %v2537
      %v2543 = vmul.f32 1.0, %v2542
      %v2544 = vpack.c.bf16 %v2498, %v2498
      %v2545 = vpack.c.bf16 %v2513, %v2513
      %v2546 = vpack.c.bf16 %v2528, %v2528
      %v2547 = vpack.c.bf16 %v2543, %v2543
      %2548 = vst [vmem:[%s207] sm:$0xf] %v2544
      %2549 = vst [vmem:[%s207 + $0x4] sm:$0xf] %v2545
      %2550 = vst [vmem:[%s207 + $0x8] sm:$0xf] %v2546
      %2551 = vst [vmem:[%s207 + $0xc] sm:$0xf] %v2547
      %s2552 = smul.u32 4, %s20
      %p2553 = scmp.lt.s32.totalorder %s19, 1
      %s2554 = scalar_select %p2553, %s19, 1
      %p2555 = scmp.lt.s32.totalorder %s2552, 3
      %s2556 = scalar_select %p2555, %s2552, 3
      %s2557 = smul.addr %s2554, 4
      %s2558 = sadd.s32 %s2556, %s2557
      %s2559 = smul.addr %s2558, 4
      %s2560 = scalar_lea.vmem %s3, %s2559
      // Predicated region
      $region33: #{conv_transpose_sigmoid.1} parent=31 // pred_check
        %p2561 = pneg %p117
      $region34: #{conv_transpose_sigmoid.1} parent=31 // pred_check_branch
        %2563 = sbr.rel (%p2561) target = $region36
      $region35: #{conv_transpose_sigmoid.1} parent=31 // pred_region
        %s2564 = smul.u32 4, %s20
      $region36: #{conv_transpose_sigmoid.1} parent=31 // pred_fallthru
        _
    $region32: #{conv_transpose_sigmoid.1} parent=5 // pred_fallthru
      _
    %p2565 = scmp.le.s32.totalorder 2, %s10
    // Predicated region
    $region37: #{conv_transpose_sigmoid.1} parent=5 // pred_check
      %p2566 = pneg %p2565
    $region38: #{conv_transpose_sigmoid.1} parent=5 // pred_check_branch
      %2568 = sbr.rel (%p2566) target = $region40
    $region39: #{conv_transpose_sigmoid.1} parent=5 // pred_region
      %s2569 = ssub.s32 %s10, 2
      // Predicated region
      $region41: #{conv_transpose_sigmoid.1} parent=39 // pred_check
        %p2570 = pneg %p123
      $region42: #{conv_transpose_sigmoid.1} parent=39 // pred_check_branch
        %2572 = sbr.rel (%p2570) target = $region44
      $region43: #{conv_transpose_sigmoid.1} parent=39 // pred_region
        %s2573 = smul.u32 4, %s22
        %p2574 = scmp.lt.s32.totalorder %s21, 1
        %s2575 = scalar_select %p2574, %s21, 1
        %p2576 = scmp.lt.s32.totalorder %s2573, 3
        %s2577 = scalar_select %p2576, %s2573, 3
        %s2578 = smul.addr %s2575, 4
        %s2579 = sadd.s32 %s2577, %s2578
        %s2580 = smul.addr %s2579, 4
        %s2581 = scalar_lea.vmem %s3, %s2580
      $region44: #{conv_transpose_sigmoid.1} parent=39 // pred_fallthru
        _
    $region40: #{conv_transpose_sigmoid.1} parent=5 // pred_fallthru
      _
  $region6: #{conv_transpose_sigmoid.1} parent=0 // loop_footer
    %s14 = sadd.s32 1, %s10
  $region7: #{conv_transpose_sigmoid.1} parent=0 // loop_footer_branch
    %9 = sbr.rel target = $region3
  $region8: #{conv_transpose_sigmoid.1} parent=0 // loop_exit
    _

</llo_original>
